<compile_context>
chip_gen: v6e
topology: v6e:2x2x1
jax: 0.10.0
libtpu: 0.0.40
codegen_flags: <defaults>
</compile_context>

<pallas_src>
import functools
import math

import jax
import jax.numpy as jnp
from jax.experimental import pallas as pl
from jax.experimental.pallas import tpu as pltpu

EPS = 1e-5                      # torch.nn.LayerNorm default
DOT_DTYPE = jnp.bfloat16        # MXU input dtype (fp32 accumulation everywhere)


def _layernorm(x, gamma, beta):
    mu = jnp.mean(x, axis=-1, keepdims=True)
    var = jnp.mean((x - mu) ** 2, axis=-1, keepdims=True)
    return (x - mu) * jax.lax.rsqrt(var + EPS) * gamma + beta


# ---------------------------------------------------------------------------
# Generation-aware sizing helpers
# ---------------------------------------------------------------------------
def _tpu_generation():
    try:
        kind = jax.devices()[0].device_kind.lower()
    except Exception:
        kind = ""
    for g in (7, 6, 5, 4):
        if f"v{g}" in kind:
            return g
    return 0


def _vmem_limit_bytes():
    g = _tpu_generation()
    if g >= 7:
        return 48 * 1024 * 1024      # v7x: 64 MiB physical per TC -> leave headroom
    if g == 6:
        return 96 * 1024 * 1024      # v6e: 128 MiB physical (32 MiB scoped default)
    if g == 5:
        return 64 * 1024 * 1024      # v5e/v5p: 128 MiB physical (16 MiB scoped default)
    return None                      # unknown generation: keep compiler defaults


def _compiler_params(dim_sem):
    vb = _vmem_limit_bytes()
    if vb is None:
        return pltpu.CompilerParams(dimension_semantics=dim_sem)
    return pltpu.CompilerParams(dimension_semantics=dim_sem, vmem_limit_bytes=vb)


def _pick_bt(B, S, target_rows=512):
    """Batch tile so Bt*S ~ target_rows (MXU M-dim fill / per-step overhead amortization).
    Prefers an exact divisor of B; falls back to a ragged (cdiv) grid rather than
    collapsing to Bt=1 when B has no friendly divisor."""
    cap = max(1, min(B, target_rows // max(S, 1)))
    best_div = max(c for c in range(1, cap + 1) if B % c == 0)
    if 2 * best_div >= cap:
        return best_div
    return cap                       # ragged last block, handled by Pallas masking


def _pick_ht(H4, M, E, vmem_budget):
    """Largest multiple-of-128 divisor of the MLP hidden dim whose per-block working set
    fits the per-generation VMEM budget (cap 1024 on v7x, 2048 elsewhere)."""
    if H4 % 128 != 0:
        return H4
    cap = 1024 if _tpu_generation() >= 7 else 2048
    # x/out blocks (double-buffered fp32) + fp32 acc + bf16 xn scratch, in bytes.
    fixed = 22 * M * E
    best = 128
    for c in range(128, H4 + 1, 128):
        if H4 % c or c > cap:
            continue
        per_c = 8 * E * c + 4 * M * c   # double-buffered bf16 (E,c)+(c,E) weights + fp32 h
        if fixed + per_c <= 0.75 * vmem_budget:
            best = c
    return best


# ---------------------------------------------------------------------------
# Kernel 1: fused LayerNorm + MultiheadAttention for all 3 streams (one call).
#   grid = (stream, batch_tile); x block is (1, Bt, S, E) batch-major.
# ---------------------------------------------------------------------------
def ln_mha_kernel(x_ref, g_ref, b_ref, wqkv_ref, bqkv_ref, wo_ref, bo_ref, o_ref,
                  *, num_heads, head_dim):
    _, Bt, S, E = x_ref.shape
    M = Bt * S

    # LayerNorm in fp32 (matches the fp32 LayerNorm subclass), batch folded into M.
    x = x_ref[0].reshape(M, E).astype(jnp.float32)            # rows ordered (batch, seq)
    xn = _layernorm(x, g_ref[0], b_ref[0])                     # (M, E) fp32

    # QKV projection: one (M,E)x(E,3E) MXU pass. The 1/sqrt(head_dim) query scale is
    # already folded into wqkv/bqkv host-side, so no per-head scale multiply here.
    qkv = jnp.dot(xn.astype(DOT_DTYPE), wqkv_ref[0],
                  preferred_element_type=jnp.float32) + bqkv_ref[0]    # (M, 3E) fp32
    qkv3 = qkv.reshape(Bt, S, 3 * E)                           # split leading dim only

    # Per-head attention core (scores are K=head_dim by construction). Head outputs are
    # lane-concatenated so the output projection is ONE K=E GEMM instead of num_heads
    # K=64 GEMMs + fp32 accumulator adds.
    heads = []
    for h in range(num_heads):                                 # static, small (E // 64)
        c0 = h * head_dim
        q = qkv3[:, :, c0:c0 + head_dim].astype(DOT_DTYPE)                   # (Bt,S,hd)
        k = qkv3[:, :, E + c0:E + c0 + head_dim].astype(DOT_DTYPE)           # (Bt,S,hd)
        v = qkv3[:, :, 2 * E + c0:2 * E + c0 + head_dim].astype(DOT_DTYPE)   # (Bt,S,hd)

        s = jnp.einsum("bqd,bkd->bqk", q, k,
                       preferred_element_type=jnp.float32)     # (Bt, S, S)
        s = s - jnp.max(s, axis=-1, keepdims=True)
        p = jnp.exp(s)
        p = p * pl.reciprocal(jnp.sum(p, axis=-1, keepdims=True))   # exact reciprocal

        o_h = jnp.einsum("bqk,bkd->bqd", p.astype(DOT_DTYPE), v,
                         preferred_element_type=jnp.float32)   # (Bt, S, hd)
        heads.append(o_h.reshape(M, head_dim))

    o_cat = heads[0] if num_heads == 1 else jnp.concatenate(heads, axis=-1)  # (M, E)
    out = jnp.dot(o_cat.astype(DOT_DTYPE), wo_ref[0],
                  preferred_element_type=jnp.float32) + bo_ref[0]
    o_ref[0] = out.reshape(Bt, S, E).astype(o_ref.dtype)


def fused_ln_mha_pallas(xs, ln_list, attn_list, *, num_heads):
    """xs: (3, B, S, E) fp32 (streams: fft-real, fft-imag, spatial)."""
    n_stream, B, S, E = xs.shape
    assert E % num_heads == 0
    head_dim = E // num_heads
    Bt = _pick_bt(B, S)
    grid_b = pl.cdiv(B, Bt)
    scale = 1.0 / math.sqrt(head_dim)

    # Fold the query scale into the Q columns of wqkv / bqkv (weight fold, free).
    col_scale = jnp.concatenate(
        [jnp.full((E,), scale, jnp.float32), jnp.ones((2 * E,), jnp.float32)])

    g_all = jnp.stack([g for (g, _) in ln_list], 0).reshape(n_stream, 1, E)
    bta_all = jnp.stack([b for (_, b) in ln_list], 0).reshape(n_stream, 1, E)
    wqkv_all = jnp.stack([p[0] * col_scale[None, :] for p in attn_list],
                         0).astype(DOT_DTYPE)                              # (3, E, 3E)
    bqkv_all = jnp.stack([p[1] * col_scale for p in attn_list],
                         0).reshape(n_stream, 1, 3 * E)
    wo_all = jnp.stack([p[2] for p in attn_list], 0).astype(DOT_DTYPE)     # (3, E, E)
    bo_all = jnp.stack([p[3] for p in attn_list], 0).reshape(n_stream, 1, E)

    kernel = functools.partial(ln_mha_kernel, num_heads=num_heads, head_dim=head_dim)

    return pl.pallas_call(
        kernel,
        out_shape=jax.ShapeDtypeStruct((n_stream, B, S, E), jnp.float32),
        grid_spec=pltpu.PrefetchScalarGridSpec(
            num_scalar_prefetch=0,
            grid=(n_stream, grid_b),      # weights re-DMA only when the stream changes
            in_specs=[
                pl.BlockSpec((1, Bt, S, E), lambda s, b: (s, b, 0, 0)),
                pl.BlockSpec((1, 1, E), lambda s, b: (s, 0, 0)),
                pl.BlockSpec((1, 1, E), lambda s, b: (s, 0, 0)),
                pl.BlockSpec((1, E, 3 * E), lambda s, b: (s, 0, 0)),
                pl.BlockSpec((1, 1, 3 * E), lambda s, b: (s, 0, 0)),
                pl.BlockSpec((1, E, E), lambda s, b: (s, 0, 0)),
                pl.BlockSpec((1, 1, E), lambda s, b: (s, 0, 0)),
            ],
            out_specs=pl.BlockSpec((1, Bt, S, E), lambda s, b: (s, b, 0, 0)),
        ),
        compiler_params=_compiler_params(("parallel", "parallel")),
    )(xs, g_all, bta_all, wqkv_all, bqkv_all, wo_all, bo_all)


# ---------------------------------------------------------------------------
# Kernel 2: fused LayerNorm + MLP (Linear -> QuickGELU -> Linear) + residual.
#   nh == 1: straight-through kernel; nh > 1: hidden dim reduced into a VMEM accumulator.
# ---------------------------------------------------------------------------
def ln_mlp_kernel_simple(x_ref, g_ref, b_ref, w1_ref, b1_ref, w2_ref, b2_ref, o_ref):
    Bt, S, E = x_ref.shape
    M = Bt * S
    x = x_ref[...].reshape(M, E).astype(jnp.float32)
    xn = _layernorm(x, g_ref[...], b_ref[...])
    h = jnp.dot(xn.astype(DOT_DTYPE), w1_ref[...],
                preferred_element_type=jnp.float32) + b1_ref[...]
    h = h * jax.nn.sigmoid(1.702 * h)                          # QuickGELU
    y = jnp.dot(h.astype(DOT_DTYPE), w2_ref[...],
                preferred_element_type=jnp.float32) + b2_ref[...]
    o_ref[...] = (x + y).reshape(Bt, S, E).astype(o_ref.dtype)  # residual fused


def ln_mlp_kernel_tiled(x_ref, g_ref, b_ref, w1_ref, b1_ref, w2_ref, b2_ref, o_ref,
                        xn_ref, acc_ref):
    j = pl.program_id(1)
    Bt, S, E = x_ref.shape
    M = Bt * S

    @pl.when(j == 0)
    def _init():
        x = x_ref[...].reshape(M, E).astype(jnp.float32)
        xn_ref[...] = _layernorm(x, g_ref[...], b_ref[...]).astype(xn_ref.dtype)
        acc_ref[...] = jnp.zeros_like(acc_ref)

    h = jnp.dot(xn_ref[...], w1_ref[...],
                preferred_element_type=jnp.float32) + b1_ref[...]   # (M, Ht)
    h = h * jax.nn.sigmoid(1.702 * h)                               # QuickGELU
    acc_ref[...] += jnp.dot(h.astype(DOT_DTYPE), w2_ref[...],
                            preferred_element_type=jnp.float32)

    @pl.when(j == pl.num_programs(1) - 1)
    def _finalize():
        x = x_ref[...].reshape(M, E).astype(jnp.float32)
        y = acc_ref[...] + b2_ref[...]
        o_ref[...] = (x + y).reshape(Bt, S, E).astype(o_ref.dtype)  # residual fused


def ln_mlp_pallas(x_bse, ln2_params, mlp_params):
    B, S, E = x_bse.shape
    gamma, beta = ln2_params
    w1_t, b1, w2_t, b2 = mlp_params
    H4 = w1_t.shape[1]
    Bt = _pick_bt(B, S)
    grid_b = pl.cdiv(B, Bt)
    M = Bt * S
    budget = _vmem_limit_bytes() or (32 << 20)
    Ht = _pick_ht(H4, M, E, budget)
    nh = H4 // Ht

    args = (x_bse, gamma.reshape(1, E), beta.reshape(1, E),
            w1_t.astype(DOT_DTYPE), b1.reshape(1, H4),
            w2_t.astype(DOT_DTYPE), b2.reshape(1, E))

    if nh == 1:
        # Whole 4E hidden dim fits: skip the reduction machinery and scratch buffers.
        return pl.pallas_call(
            ln_mlp_kernel_simple,
            out_shape=jax.ShapeDtypeStruct((B, S, E), x_bse.dtype),
            grid_spec=pltpu.PrefetchScalarGridSpec(
                num_scalar_prefetch=0,
                grid=(grid_b,),
                in_specs=[
                    pl.BlockSpec((Bt, S, E), lambda i: (i, 0, 0)),
                    pl.BlockSpec((1, E), lambda i: (0, 0)),
                    pl.BlockSpec((1, E), lambda i: (0, 0)),
                    pl.BlockSpec((E, H4), lambda i: (0, 0)),
                    pl.BlockSpec((1, H4), lambda i: (0, 0)),
                    pl.BlockSpec((H4, E), lambda i: (0, 0)),
                    pl.BlockSpec((1, E), lambda i: (0, 0)),
                ],
                out_specs=pl.BlockSpec((Bt, S, E), lambda i: (i, 0, 0)),
            ),
            compiler_params=_compiler_params(("parallel",)),
        )(*args)

    return pl.pallas_call(
        ln_mlp_kernel_tiled,
        out_shape=jax.ShapeDtypeStruct((B, S, E), x_bse.dtype),
        grid_spec=pltpu.PrefetchScalarGridSpec(
            num_scalar_prefetch=0,
            grid=(grid_b, nh),                     # hidden (reduction) axis last
            in_specs=[
                pl.BlockSpec((Bt, S, E), lambda i, j: (i, 0, 0)),
                pl.BlockSpec((1, E), lambda i, j: (0, 0)),
                pl.BlockSpec((1, E), lambda i, j: (0, 0)),
                pl.BlockSpec((E, Ht), lambda i, j: (0, j)),
                pl.BlockSpec((1, Ht), lambda i, j: (0, j)),
                pl.BlockSpec((Ht, E), lambda i, j: (j, 0)),
                pl.BlockSpec((1, E), lambda i, j: (0, 0)),
            ],
            out_specs=pl.BlockSpec((Bt, S, E), lambda i, j: (i, 0, 0)),
            scratch_shapes=[pltpu.VMEM((M, E), DOT_DTYPE),      # LN output (reused)
                            pltpu.VMEM((M, E), jnp.float32)],   # fp32 accumulator
        ),
        compiler_params=_compiler_params(("parallel", "arbitrary")),
    )(*args)


# ---------------------------------------------------------------------------
# Full GatedSFAttentionBlock0 forward  (feature is (S, B, E), seq-first)
# ---------------------------------------------------------------------------
def gated_sf_attention_block(feature, params, *, num_heads):
    S, B, E = feature.shape
    f32 = feature.astype(jnp.float32)

    # Go batch-major once up front (single (S,B,E) tensor), then fft2 over the (B, E)
    # axes == torch.fft.fft2 over the last two dims of the original (S, B, E) layout.
    feat_bse = jnp.transpose(f32, (1, 0, 2))                    # (B, S, E)
    x_ft = jnp.fft.fft2(feat_bse, axes=(0, 2))

    # Streams stacked directly batch-major -> no (3,S,B,E)->(3,B,S,E) HBM round trip.
    xs = jnp.stack([jnp.real(x_ft), jnp.imag(x_ft), feat_bse], axis=0)   # (3, B, S, E)

    attn = fused_ln_mha_pallas(
        xs,
        [params["ln_r"], params["ln_i"], params["ln_1"]],
        [params["attn_fr"], params["attn_fi"], params["attn_s"]],
        num_heads=num_heads)                                    # (3, B, S, E)

    x_real, x_imag, attn_s = attn[0], attn[1], attn[2]          # (B, S, E) each

    # view_as_complex(stack([real-imag, real+imag], -1)); ifft2 over the original
    # (B, E) dims, which are axes (0, 2) in the batch-major layout.
    x_ft_new = (x_real - x_imag) + 1j * (x_real + x_imag)
    sf = jnp.real(jnp.fft.ifft2(x_ft_new, axes=(0, 2)))

    x_new = feat_bse + attn_s + sf
    x_out_bse = ln_mlp_pallas(x_new, params["ln_2"], params["mlp"])  # includes residual
    x_out = jnp.transpose(x_out_bse, (1, 0, 2)).astype(feature.dtype)

    # TODO(synk): the PyTorch forward reads self.mlp.l_aux / self.aux_loss_weights, which do
    # not exist on a plain nn.Sequential MLP (it would raise AttributeError); emit zero.
    moe_aux_loss = jnp.zeros((), jnp.float32)
    return x_out, moe_aux_loss


# ---------------------------------------------------------------------------
# Pure-JAX fp32 reference (mirrors the PyTorch math) for sanity checking
# ---------------------------------------------------------------------------
def reference_forward(feature, params, *, num_heads):
    def mha(x_sbe, g, bt, wqkv_t, bqkv, wo_t, bo):
        S, B, E = x_sbe.shape
        hd = E // num_heads
        xn = _layernorm(x_sbe.astype(jnp.float32), g, bt)
        qkv = jnp.einsum("sbe,ef->sbf", xn, wqkv_t) + bqkv
        q, k, v = qkv[..., :E], qkv[..., E:2 * E], qkv[..., 2 * E:]
        split = lambda t: t.reshape(S, B, num_heads, hd)
        q, k, v = split(q) / jnp.sqrt(hd), split(k), split(v)
        s = jnp.einsum("sbhd,tbhd->bhst", q, k)
        p = jax.nn.softmax(s, axis=-1)
        o = jnp.einsum("bhst,tbhd->sbhd", p, v).reshape(S, B, E)
        return jnp.einsum("sbe,ef->sbf", o, wo_t) + bo

    def mlp(x_sbe, g, bt, w1_t, b1, w2_t, b2):
        xn = _layernorm(x_sbe.astype(jnp.float32), g, bt)
        h = jnp.einsum("sbe,ef->sbf", xn, w1_t) + b1
        h = h * jax.nn.sigmoid(1.702 * h)
        return jnp.einsum("sbf,fe->sbe", h, w2_t) + b2

    x_ft = jnp.fft.fft2(feature.astype(jnp.float32))
    xr = mha(jnp.real(x_ft), *params["ln_r"], *params["attn_fr"])
    xi = mha(jnp.imag(x_ft), *params["ln_i"], *params["attn_fi"])
    x_ft_new = (xr - xi) + 1j * (xr + xi)
    x_new = feature + mha(feature, *params["ln_1"], *params["attn_s"]) \
        + jnp.real(jnp.fft.ifft2(x_ft_new))
    x_out = x_new + mlp(x_new, *params["ln_2"], *params["mlp"])
    return x_out, jnp.zeros((), jnp.float32)


# ---------------------------------------------------------------------------
# Deterministic parameter init (shapes follow the PyTorch module __init__)
# ---------------------------------------------------------------------------
def init_params(key, embed_dim):
    E = embed_dim
    ks = jax.random.split(key, 16)
    nrm = lambda k, shape, s=0.02: (s * jax.random.normal(k, shape)).astype(jnp.float32)

    def ln_params(k):
        k1, k2 = jax.random.split(k)
        return (1.0 + nrm(k1, (E,), 0.05), nrm(k2, (E,), 0.05))

    def mha_params(k):
        k1, k2, k3, k4 = jax.random.split(k, 4)
        wqkv = nrm(k1, (3 * E, E))       # in_proj_weight (3E, E)
        bqkv = nrm(k2, (3 * E,))         # in_proj_bias
        wo = nrm(k3, (E, E))             # out_proj.weight
        bo = nrm(k4, (E,))               # out_proj.bias
        return (wqkv.T, bqkv, wo.T, bo)  # pre-transposed for x @ W.T

    def mlp_params(k):
        k1, k2, k3, k4 = jax.random.split(k, 4)
        w1 = nrm(k1, (4 * E, E))         # c_fc.weight
        b1 = nrm(k2, (4 * E,))
        w2 = nrm(k3, (E, 4 * E))         # c_proj.weight
        b2 = nrm(k4, (E,))
        return (w1.T, b1, w2.T, b2)

    return {
        "ln_r": ln_params(ks[0]), "ln_i": ln_params(ks[1]),
        "ln_1": ln_params(ks[2]), "ln_2": ln_params(ks[3]),
        "attn_fr": mha_params(ks[4]), "attn_fi": mha_params(ks[5]),
        "attn_s": mha_params(ks[6]), "mlp": mlp_params(ks[7]),
    }


if __name__ == "__main__":
    # Small shapes consistent with the module: E divisible by 64 (heads = E // 64).
    S, B, E = 8, 2, 128
    NUM_HEADS = E // 64

    key = jax.random.PRNGKey(0)
    k_feat, k_par = jax.random.split(key)
    feature = jax.random.normal(k_feat, (S, B, E), dtype=jnp.float32)
    params = init_params(k_par, E)

    fwd = jax.jit(functools.partial(gated_sf_attention_block, num_heads=NUM_HEADS))
    out, aux = fwd(feature, params)
    out = jax.block_until_ready(out)
    aux = jax.block_until_ready(aux)

    ref_out, _ = reference_forward(feature, params, num_heads=NUM_HEADS)
    max_err = float(jnp.max(jnp.abs(out - ref_out)))
    assert out.shape == (S, B, E) and aux.shape == ()
    # bf16 MXU inputs (fp32 accumulation) -> slightly looser tolerance than pure fp32.
    assert max_err < 2e-2, f"mismatch vs reference: {max_err}"

    print("KERNEL_OK")
</pallas_src>

<mosaic_0001>
module attributes {stable_mosaic.version = 11 : i64} {
  func.func @ln_mha_kernel(%arg0: i32, %arg1: i32, %arg2: memref<1x2x8x128xf32, #tpu.memory_space<vmem>>, %arg3: memref<1x1x128xf32, #tpu.memory_space<vmem>>, %arg4: memref<1x1x128xf32, #tpu.memory_space<vmem>>, %arg5: memref<1x128x384xbf16, #tpu.memory_space<vmem>>, %arg6: memref<1x1x384xf32, #tpu.memory_space<vmem>>, %arg7: memref<1x128x128xbf16, #tpu.memory_space<vmem>>, %arg8: memref<1x1x128xf32, #tpu.memory_space<vmem>>, %arg9: memref<1x2x8x128xf32, #tpu.memory_space<vmem>>) attributes {dimension_semantics = [#tpu.dimension_semantics<parallel>, #tpu.dimension_semantics<parallel>], iteration_bounds = array<i64: 3, 1>, scalar_prefetch = 0 : i64, scratch_operands = 0 : i64, tpu.core_type = #tpu.core_type<tc>, window_params = [{transform_indices = @transform_0, window_bounds = array<i64: 1, 2, 8, 128>}, {transform_indices = @transform_1, window_bounds = array<i64: 1, 1, 128>}, {transform_indices = @transform_2, window_bounds = array<i64: 1, 1, 128>}, {transform_indices = @transform_3, window_bounds = array<i64: 1, 128, 384>}, {transform_indices = @transform_4, window_bounds = array<i64: 1, 1, 384>}, {transform_indices = @transform_5, window_bounds = array<i64: 1, 128, 128>}, {transform_indices = @transform_6, window_bounds = array<i64: 1, 1, 128>}, {transform_indices = @transform_7, window_bounds = array<i64: 1, 2, 8, 128>}]} {
    %c0 = arith.constant 0 : index
    %c0_0 = arith.constant 0 : index
    %c0_1 = arith.constant 0 : index
    %c0_2 = arith.constant 0 : index
    %0 = vector.load %arg2[%c0, %c0_0, %c0_1, %c0_2] : memref<1x2x8x128xf32, #tpu.memory_space<vmem>>, vector<1x2x8x128xf32>
    %1 = vector.shape_cast %0 : vector<1x2x8x128xf32> to vector<2x8x128xf32>
    %2 = vector.shape_cast %1 : vector<2x8x128xf32> to vector<16x128xf32>
    %c0_3 = arith.constant 0 : index
    %c0_4 = arith.constant 0 : index
    %c0_5 = arith.constant 0 : index
    %3 = vector.load %arg3[%c0_3, %c0_4, %c0_5] : memref<1x1x128xf32, #tpu.memory_space<vmem>>, vector<1x1x128xf32>
    %4 = vector.shape_cast %3 : vector<1x1x128xf32> to vector<1x128xf32>
    %c0_6 = arith.constant 0 : index
    %c0_7 = arith.constant 0 : index
    %c0_8 = arith.constant 0 : index
    %5 = vector.load %arg4[%c0_6, %c0_7, %c0_8] : memref<1x1x128xf32, #tpu.memory_space<vmem>>, vector<1x1x128xf32>
    %6 = vector.shape_cast %5 : vector<1x1x128xf32> to vector<1x128xf32>
    %cst = arith.constant dense<0.000000e+00> : vector<16xf32>
    %7 = vector.multi_reduction <add>, %2, %cst [1] : vector<16x128xf32> to vector<16xf32>
    %8 = vector.shape_cast %7 : vector<16xf32> to vector<16x1xf32>
    %cst_9 = arith.constant 1.280000e+02 : f32
    %9 = vector.broadcast %cst_9 : f32 to vector<16x1xf32>
    %10 = arith.divf %8, %9 : vector<16x1xf32>
    %11 = vector.broadcast %10 : vector<16x1xf32> to vector<16x128xf32>
    %12 = arith.subf %2, %11 : vector<16x128xf32>
    %13 = arith.mulf %12, %12 : vector<16x128xf32>
    %cst_10 = arith.constant dense<0.000000e+00> : vector<16xf32>
    %14 = vector.multi_reduction <add>, %13, %cst_10 [1] : vector<16x128xf32> to vector<16xf32>
    %15 = vector.shape_cast %14 : vector<16xf32> to vector<16x1xf32>
    %cst_11 = arith.constant 1.280000e+02 : f32
    %16 = vector.broadcast %cst_11 : f32 to vector<16x1xf32>
    %17 = arith.divf %15, %16 : vector<16x1xf32>
    %18 = vector.broadcast %10 : vector<16x1xf32> to vector<16x128xf32>
    %19 = arith.subf %2, %18 : vector<16x128xf32>
    %cst_12 = arith.constant 9.99999974E-6 : f32
    %20 = vector.broadcast %cst_12 : f32 to vector<16x1xf32>
    %21 = arith.addf %17, %20 : vector<16x1xf32>
    %22 = math.rsqrt %21 : vector<16x1xf32>
    %23 = vector.broadcast %22 : vector<16x1xf32> to vector<16x128xf32>
    %24 = arith.mulf %19, %23 : vector<16x128xf32>
    %25 = vector.broadcast %4 : vector<1x128xf32> to vector<16x128xf32>
    %26 = arith.mulf %24, %25 : vector<16x128xf32>
    %27 = vector.broadcast %6 : vector<1x128xf32> to vector<16x128xf32>
    %28 = arith.addf %26, %27 : vector<16x128xf32>
    %29 = arith.truncf %28 : vector<16x128xf32> to vector<16x128xbf16>
    %c0_13 = arith.constant 0 : index
    %c0_14 = arith.constant 0 : index
    %c0_15 = arith.constant 0 : index
    %30 = vector.load %arg5[%c0_13, %c0_14, %c0_15] : memref<1x128x384xbf16, #tpu.memory_space<vmem>>, vector<1x128x384xbf16>
    %31 = vector.shape_cast %30 : vector<1x128x384xbf16> to vector<128x384xbf16>
    %cst_16 = arith.constant dense<0.000000e+00> : vector<16x384xf32>
    %32 = tpu.matmul %29, %31, %cst_16 {dimension_numbers = #tpu.dot_dimension_numbers<[1], [0], [0], [1], [0, 0, 1, 1], [], []>} : vector<16x128xbf16>, vector<128x384xbf16>, vector<16x384xf32> -> vector<16x384xf32>
    %c0_17 = arith.constant 0 : index
    %c0_18 = arith.constant 0 : index
    %c0_19 = arith.constant 0 : index
    %33 = vector.load %arg6[%c0_17, %c0_18, %c0_19] : memref<1x1x384xf32, #tpu.memory_space<vmem>>, vector<1x1x384xf32>
    %34 = vector.shape_cast %33 : vector<1x1x384xf32> to vector<1x384xf32>
    %35 = vector.broadcast %34 : vector<1x384xf32> to vector<16x384xf32>
    %36 = arith.addf %32, %35 : vector<16x384xf32>
    %37 = vector.shape_cast %36 : vector<16x384xf32> to vector<2x8x384xf32>
    %38 = vector.extract_strided_slice %37 {offsets = [0, 0, 0], sizes = [2, 8, 64], strides = [1, 1, 1]} : vector<2x8x384xf32> to vector<2x8x64xf32>
    %39 = arith.truncf %38 : vector<2x8x64xf32> to vector<2x8x64xbf16>
    %40 = vector.extract_strided_slice %37 {offsets = [0, 0, 128], sizes = [2, 8, 64], strides = [1, 1, 1]} : vector<2x8x384xf32> to vector<2x8x64xf32>
    %41 = arith.truncf %40 : vector<2x8x64xf32> to vector<2x8x64xbf16>
    %42 = vector.extract_strided_slice %37 {offsets = [0, 0, 256], sizes = [2, 8, 64], strides = [1, 1, 1]} : vector<2x8x384xf32> to vector<2x8x64xf32>
    %43 = arith.truncf %42 : vector<2x8x64xf32> to vector<2x8x64xbf16>
    "tpu.trace_start"() <{level = 10 : i32, message = "bqd,bkd->bqk"}> : () -> ()
    %cst_20 = arith.constant dense<0.000000e+00> : vector<2x8x8xf32>
    %44 = tpu.matmul %39, %41, %cst_20 {dimension_numbers = #tpu.dot_dimension_numbers<[2], [2], [1], [1], [0, 0, 0, 1, 1, 1], [0], [0]>} : vector<2x8x64xbf16>, vector<2x8x64xbf16>, vector<2x8x8xf32> -> vector<2x8x8xf32>
    "tpu.trace_stop"() : () -> ()
    %cst_21 = arith.constant dense<0xFF800000> : vector<2x8xf32>
    %45 = vector.multi_reduction <maximumf>, %44, %cst_21 [2] : vector<2x8x8xf32> to vector<2x8xf32>
    %46 = vector.shape_cast %45 : vector<2x8xf32> to vector<2x8x1xf32>
    %47 = vector.broadcast %46 : vector<2x8x1xf32> to vector<2x8x8xf32>
    %48 = arith.subf %44, %47 : vector<2x8x8xf32>
    %49 = math.exp %48 : vector<2x8x8xf32>
    %cst_22 = arith.constant dense<0.000000e+00> : vector<2x8xf32>
    %50 = vector.multi_reduction <add>, %49, %cst_22 [2] : vector<2x8x8xf32> to vector<2x8xf32>
    %51 = vector.shape_cast %50 : vector<2x8xf32> to vector<2x8x1xf32>
    %52 = tpu.reciprocal %51 : vector<2x8x1xf32> -> vector<2x8x1xf32>
    %53 = vector.broadcast %52 : vector<2x8x1xf32> to vector<2x8x8xf32>
    %54 = arith.mulf %49, %53 : vector<2x8x8xf32>
    %55 = arith.truncf %54 : vector<2x8x8xf32> to vector<2x8x8xbf16>
    "tpu.trace_start"() <{level = 10 : i32, message = "bqk,bkd->bqd"}> : () -> ()
    %cst_23 = arith.constant dense<0.000000e+00> : vector<2x8x64xf32>
    %56 = tpu.matmul %55, %43, %cst_23 {dimension_numbers = #tpu.dot_dimension_numbers<[2], [1], [1], [2], [0, 0, 0, 1, 1, 2], [0], [0]>} : vector<2x8x8xbf16>, vector<2x8x64xbf16>, vector<2x8x64xf32> -> vector<2x8x64xf32>
    "tpu.trace_stop"() : () -> ()
    %57 = vector.shape_cast %56 : vector<2x8x64xf32> to vector<16x64xf32>
    %58 = vector.extract_strided_slice %37 {offsets = [0, 0, 64], sizes = [2, 8, 64], strides = [1, 1, 1]} : vector<2x8x384xf32> to vector<2x8x64xf32>
    %59 = arith.truncf %58 : vector<2x8x64xf32> to vector<2x8x64xbf16>
    %60 = vector.extract_strided_slice %37 {offsets = [0, 0, 192], sizes = [2, 8, 64], strides = [1, 1, 1]} : vector<2x8x384xf32> to vector<2x8x64xf32>
    %61 = arith.truncf %60 : vector<2x8x64xf32> to vector<2x8x64xbf16>
    %62 = vector.extract_strided_slice %37 {offsets = [0, 0, 320], sizes = [2, 8, 64], strides = [1, 1, 1]} : vector<2x8x384xf32> to vector<2x8x64xf32>
    %63 = arith.truncf %62 : vector<2x8x64xf32> to vector<2x8x64xbf16>
    "tpu.trace_start"() <{level = 10 : i32, message = "bqd,bkd->bqk"}> : () -> ()
    %cst_24 = arith.constant dense<0.000000e+00> : vector<2x8x8xf32>
    %64 = tpu.matmul %59, %61, %cst_24 {dimension_numbers = #tpu.dot_dimension_numbers<[2], [2], [1], [1], [0, 0, 0, 1, 1, 1], [0], [0]>} : vector<2x8x64xbf16>, vector<2x8x64xbf16>, vector<2x8x8xf32> -> vector<2x8x8xf32>
    "tpu.trace_stop"() : () -> ()
    %cst_25 = arith.constant dense<0xFF800000> : vector<2x8xf32>
    %65 = vector.multi_reduction <maximumf>, %64, %cst_25 [2] : vector<2x8x8xf32> to vector<2x8xf32>
    %66 = vector.shape_cast %65 : vector<2x8xf32> to vector<2x8x1xf32>
    %67 = vector.broadcast %66 : vector<2x8x1xf32> to vector<2x8x8xf32>
    %68 = arith.subf %64, %67 : vector<2x8x8xf32>
    %69 = math.exp %68 : vector<2x8x8xf32>
    %cst_26 = arith.constant dense<0.000000e+00> : vector<2x8xf32>
    %70 = vector.multi_reduction <add>, %69, %cst_26 [2] : vector<2x8x8xf32> to vector<2x8xf32>
    %71 = vector.shape_cast %70 : vector<2x8xf32> to vector<2x8x1xf32>
    %72 = tpu.reciprocal %71 : vector<2x8x1xf32> -> vector<2x8x1xf32>
    %73 = vector.broadcast %72 : vector<2x8x1xf32> to vector<2x8x8xf32>
    %74 = arith.mulf %69, %73 : vector<2x8x8xf32>
    %75 = arith.truncf %74 : vector<2x8x8xf32> to vector<2x8x8xbf16>
    "tpu.trace_start"() <{level = 10 : i32, message = "bqk,bkd->bqd"}> : () -> ()
    %cst_27 = arith.constant dense<0.000000e+00> : vector<2x8x64xf32>
    %76 = tpu.matmul %75, %63, %cst_27 {dimension_numbers = #tpu.dot_dimension_numbers<[2], [1], [1], [2], [0, 0, 0, 1, 1, 2], [0], [0]>} : vector<2x8x8xbf16>, vector<2x8x64xbf16>, vector<2x8x64xf32> -> vector<2x8x64xf32>
    "tpu.trace_stop"() : () -> ()
    %77 = vector.shape_cast %76 : vector<2x8x64xf32> to vector<16x64xf32>
    %78 = tpu.concatenate %57, %77 in 1 : vector<16x64xf32>, vector<16x64xf32> -> vector<16x128xf32>
    %79 = arith.truncf %78 : vector<16x128xf32> to vector<16x128xbf16>
    %c0_28 = arith.constant 0 : index
    %c0_29 = arith.constant 0 : index
    %c0_30 = arith.constant 0 : index
    %80 = vector.load %arg7[%c0_28, %c0_29, %c0_30] : memref<1x128x128xbf16, #tpu.memory_space<vmem>>, vector<1x128x128xbf16>
    %81 = vector.shape_cast %80 : vector<1x128x128xbf16> to vector<128x128xbf16>
    %cst_31 = arith.constant dense<0.000000e+00> : vector<16x128xf32>
    %82 = tpu.matmul %79, %81, %cst_31 {dimension_numbers = #tpu.dot_dimension_numbers<[1], [0], [0], [1], [0, 0, 1, 1], [], []>} : vector<16x128xbf16>, vector<128x128xbf16>, vector<16x128xf32> -> vector<16x128xf32>
    %c0_32 = arith.constant 0 : index
    %c0_33 = arith.constant 0 : index
    %c0_34 = arith.constant 0 : index
    %83 = vector.load %arg8[%c0_32, %c0_33, %c0_34] : memref<1x1x128xf32, #tpu.memory_space<vmem>>, vector<1x1x128xf32>
    %84 = vector.shape_cast %83 : vector<1x1x128xf32> to vector<1x128xf32>
    %85 = vector.broadcast %84 : vector<1x128xf32> to vector<16x128xf32>
    %86 = arith.addf %82, %85 : vector<16x128xf32>
    %87 = vector.shape_cast %86 : vector<16x128xf32> to vector<2x8x128xf32>
    %c0_35 = arith.constant 0 : index
    %c0_36 = arith.constant 0 : index
    %c0_37 = arith.constant 0 : index
    %c0_38 = arith.constant 0 : index
    %88 = vector.load %arg9[%c0_35, %c0_36, %c0_37, %c0_38] : memref<1x2x8x128xf32, #tpu.memory_space<vmem>>, vector<1x2x8x128xf32>
    %89 = vector.shape_cast %88 : vector<1x2x8x128xf32> to vector<2x8x128xf32>
    %90 = vector.shape_cast %87 : vector<2x8x128xf32> to vector<1x2x8x128xf32>
    tpu.vector_store %arg9[%c0_35, %c0_36, %c0_37, %c0_38], %90 {strides = array<i32>} : memref<1x2x8x128xf32, #tpu.memory_space<vmem>>, vector<1x2x8x128xf32>,
    return
  }
  func.func @transform_0(%arg0: i32, %arg1: i32) -> (i32, i32, i32, i32) {
    %c0_i32 = arith.constant 0 : i32
    %c0_i32_0 = arith.constant 0 : i32
    %c0_i32_1 = arith.constant 0 : i32
    return %arg0, %arg1, %c0_i32, %c0_i32_0 : i32, i32, i32, i32
  }
  func.func @transform_1(%arg0: i32, %arg1: i32) -> (i32, i32, i32) {
    %c0_i32 = arith.constant 0 : i32
    %c0_i32_0 = arith.constant 0 : i32
    %c0_i32_1 = arith.constant 0 : i32
    return %arg0, %c0_i32, %c0_i32_0 : i32, i32, i32
  }
  func.func @transform_2(%arg0: i32, %arg1: i32) -> (i32, i32, i32) {
    %c0_i32 = arith.constant 0 : i32
    %c0_i32_0 = arith.constant 0 : i32
    %c0_i32_1 = arith.constant 0 : i32
    return %arg0, %c0_i32, %c0_i32_0 : i32, i32, i32
  }
  func.func @transform_3(%arg0: i32, %arg1: i32) -> (i32, i32, i32) {
    %c0_i32 = arith.constant 0 : i32
    %c0_i32_0 = arith.constant 0 : i32
    %c0_i32_1 = arith.constant 0 : i32
    return %arg0, %c0_i32, %c0_i32_0 : i32, i32, i32
  }
  func.func @transform_4(%arg0: i32, %arg1: i32) -> (i32, i32, i32) {
    %c0_i32 = arith.constant 0 : i32
    %c0_i32_0 = arith.constant 0 : i32
    %c0_i32_1 = arith.constant 0 : i32
    return %arg0, %c0_i32, %c0_i32_0 : i32, i32, i32
  }
  func.func @transform_5(%arg0: i32, %arg1: i32) -> (i32, i32, i32) {
    %c0_i32 = arith.constant 0 : i32
    %c0_i32_0 = arith.constant 0 : i32
    %c0_i32_1 = arith.constant 0 : i32
    return %arg0, %c0_i32, %c0_i32_0 : i32, i32, i32
  }
  func.func @transform_6(%arg0: i32, %arg1: i32) -> (i32, i32, i32) {
    %c0_i32 = arith.constant 0 : i32
    %c0_i32_0 = arith.constant 0 : i32
    %c0_i32_1 = arith.constant 0 : i32
    return %arg0, %c0_i32, %c0_i32_0 : i32, i32, i32
  }
  func.func @transform_7(%arg0: i32, %arg1: i32) -> (i32, i32, i32, i32) {
    %c0_i32 = arith.constant 0 : i32
    %c0_i32_0 = arith.constant 0 : i32
    %c0_i32_1 = arith.constant 0 : i32
    return %arg0, %arg1, %c0_i32, %c0_i32_0 : i32, i32, i32, i32
  }
}

module attributes {stable_mosaic.version = 11 : i64} {
  func.func @ln_mlp_kernel_simple(%arg0: i32, %arg1: memref<2x8x128xf32, #tpu.memory_space<vmem>>, %arg2: memref<1x128xf32, #tpu.memory_space<vmem>>, %arg3: memref<1x128xf32, #tpu.memory_space<vmem>>, %arg4: memref<128x512xbf16, #tpu.memory_space<vmem>>, %arg5: memref<1x512xf32, #tpu.memory_space<vmem>>, %arg6: memref<512x128xbf16, #tpu.memory_space<vmem>>, %arg7: memref<1x128xf32, #tpu.memory_space<vmem>>, %arg8: memref<2x8x128xf32, #tpu.memory_space<vmem>>) attributes {dimension_semantics = [#tpu.dimension_semantics<parallel>], iteration_bounds = array<i64: 1>, scalar_prefetch = 0 : i64, scratch_operands = 0 : i64, tpu.core_type = #tpu.core_type<tc>, window_params = [{transform_indices = @transform_0, window_bounds = array<i64: 2, 8, 128>}, {pipeline_mode = #tpu.pipeline_mode<synchronous>, transform_indices = @transform_1, window_bounds = array<i64: 1, 128>}, {pipeline_mode = #tpu.pipeline_mode<synchronous>, transform_indices = @transform_2, window_bounds = array<i64: 1, 128>}, {pipeline_mode = #tpu.pipeline_mode<synchronous>, transform_indices = @transform_3, window_bounds = array<i64: 128, 512>}, {pipeline_mode = #tpu.pipeline_mode<synchronous>, transform_indices = @transform_4, window_bounds = array<i64: 1, 512>}, {pipeline_mode = #tpu.pipeline_mode<synchronous>, transform_indices = @transform_5, window_bounds = array<i64: 512, 128>}, {pipeline_mode = #tpu.pipeline_mode<synchronous>, transform_indices = @transform_6, window_bounds = array<i64: 1, 128>}, {transform_indices = @transform_7, window_bounds = array<i64: 2, 8, 128>}]} {
    %c0 = arith.constant 0 : index
    %c0_0 = arith.constant 0 : index
    %c0_1 = arith.constant 0 : index
    %0 = vector.load %arg1[%c0, %c0_0, %c0_1] : memref<2x8x128xf32, #tpu.memory_space<vmem>>, vector<2x8x128xf32>
    %1 = vector.shape_cast %0 : vector<2x8x128xf32> to vector<16x128xf32>
    %c0_2 = arith.constant 0 : index
    %c0_3 = arith.constant 0 : index
    %2 = vector.load %arg2[%c0_2, %c0_3] : memref<1x128xf32, #tpu.memory_space<vmem>>, vector<1x128xf32>
    %c0_4 = arith.constant 0 : index
    %c0_5 = arith.constant 0 : index
    %3 = vector.load %arg3[%c0_4, %c0_5] : memref<1x128xf32, #tpu.memory_space<vmem>>, vector<1x128xf32>
    %cst = arith.constant dense<0.000000e+00> : vector<16xf32>
    %4 = vector.multi_reduction <add>, %1, %cst [1] : vector<16x128xf32> to vector<16xf32>
    %5 = vector.shape_cast %4 : vector<16xf32> to vector<16x1xf32>
    %cst_6 = arith.constant 1.280000e+02 : f32
    %6 = vector.broadcast %cst_6 : f32 to vector<16x1xf32>
    %7 = arith.divf %5, %6 : vector<16x1xf32>
    %8 = vector.broadcast %7 : vector<16x1xf32> to vector<16x128xf32>
    %9 = arith.subf %1, %8 : vector<16x128xf32>
    %10 = arith.mulf %9, %9 : vector<16x128xf32>
    %cst_7 = arith.constant dense<0.000000e+00> : vector<16xf32>
    %11 = vector.multi_reduction <add>, %10, %cst_7 [1] : vector<16x128xf32> to vector<16xf32>
    %12 = vector.shape_cast %11 : vector<16xf32> to vector<16x1xf32>
    %cst_8 = arith.constant 1.280000e+02 : f32
    %13 = vector.broadcast %cst_8 : f32 to vector<16x1xf32>
    %14 = arith.divf %12, %13 : vector<16x1xf32>
    %15 = vector.broadcast %7 : vector<16x1xf32> to vector<16x128xf32>
    %16 = arith.subf %1, %15 : vector<16x128xf32>
    %cst_9 = arith.constant 9.99999974E-6 : f32
    %17 = vector.broadcast %cst_9 : f32 to vector<16x1xf32>
    %18 = arith.addf %14, %17 : vector<16x1xf32>
    %19 = math.rsqrt %18 : vector<16x1xf32>
    %20 = vector.broadcast %19 : vector<16x1xf32> to vector<16x128xf32>
    %21 = arith.mulf %16, %20 : vector<16x128xf32>
    %22 = vector.broadcast %2 : vector<1x128xf32> to vector<16x128xf32>
    %23 = arith.mulf %21, %22 : vector<16x128xf32>
    %24 = vector.broadcast %3 : vector<1x128xf32> to vector<16x128xf32>
    %25 = arith.addf %23, %24 : vector<16x128xf32>
    %26 = arith.truncf %25 : vector<16x128xf32> to vector<16x128xbf16>
    %c0_10 = arith.constant 0 : index
    %c0_11 = arith.constant 0 : index
    %27 = vector.load %arg4[%c0_10, %c0_11] : memref<128x512xbf16, #tpu.memory_space<vmem>>, vector<128x512xbf16>
    %cst_12 = arith.constant dense<0.000000e+00> : vector<16x512xf32>
    %28 = tpu.matmul %26, %27, %cst_12 {dimension_numbers = #tpu.dot_dimension_numbers<[1], [0], [0], [1], [0, 0, 1, 1], [], []>} : vector<16x128xbf16>, vector<128x512xbf16>, vector<16x512xf32> -> vector<16x512xf32>
    %c0_13 = arith.constant 0 : index
    %c0_14 = arith.constant 0 : index
    %29 = vector.load %arg5[%c0_13, %c0_14] : memref<1x512xf32, #tpu.memory_space<vmem>>, vector<1x512xf32>
    %30 = vector.broadcast %29 : vector<1x512xf32> to vector<16x512xf32>
    %31 = arith.addf %28, %30 : vector<16x512xf32>
    %cst_15 = arith.constant 1.702000e+00 : f32
    %32 = vector.broadcast %cst_15 : f32 to vector<16x512xf32>
    %33 = arith.mulf %32, %31 : vector<16x512xf32>
    %34 = arith.negf %33 : vector<16x512xf32>
    %35 = math.exp %34 : vector<16x512xf32>
    %cst_16 = arith.constant 1.000000e+00 : f32
    %36 = vector.broadcast %cst_16 : f32 to vector<16x512xf32>
    %37 = arith.addf %36, %35 : vector<16x512xf32>
    %38 = arith.divf %36, %37 : vector<16x512xf32>
    %39 = arith.mulf %31, %38 : vector<16x512xf32>
    %40 = arith.truncf %39 : vector<16x512xf32> to vector<16x512xbf16>
    %c0_17 = arith.constant 0 : index
    %c0_18 = arith.constant 0 : index
    %41 = vector.load %arg6[%c0_17, %c0_18] : memref<512x128xbf16, #tpu.memory_space<vmem>>, vector<512x128xbf16>
    %cst_19 = arith.constant dense<0.000000e+00> : vector<16x128xf32>
    %42 = tpu.matmul %40, %41, %cst_19 {dimension_numbers = #tpu.dot_dimension_numbers<[1], [0], [0], [1], [0, 0, 1, 1], [], []>} : vector<16x512xbf16>, vector<512x128xbf16>, vector<16x128xf32> -> vector<16x128xf32>
    %c0_20 = arith.constant 0 : index
    %c0_21 = arith.constant 0 : index
    %43 = vector.load %arg7[%c0_20, %c0_21] : memref<1x128xf32, #tpu.memory_space<vmem>>, vector<1x128xf32>
    %44 = vector.broadcast %43 : vector<1x128xf32> to vector<16x128xf32>
    %45 = arith.addf %42, %44 : vector<16x128xf32>
    %46 = arith.addf %1, %45 : vector<16x128xf32>
    %47 = vector.shape_cast %46 : vector<16x128xf32> to vector<2x8x128xf32>
    %c0_22 = arith.constant 0 : index
    %c0_23 = arith.constant 0 : index
    %c0_24 = arith.constant 0 : index
    %48 = vector.load %arg8[%c0_22, %c0_23, %c0_24] : memref<2x8x128xf32, #tpu.memory_space<vmem>>, vector<2x8x128xf32>
    tpu.vector_store %arg8[%c0_22, %c0_23, %c0_24], %47 {strides = array<i32>} : memref<2x8x128xf32, #tpu.memory_space<vmem>>, vector<2x8x128xf32>,
    return
  }
  func.func @transform_0(%arg0: i32) -> (i32, i32, i32) {
    %c0_i32 = arith.constant 0 : i32
    %c0_i32_0 = arith.constant 0 : i32
    %c0_i32_1 = arith.constant 0 : i32
    return %arg0, %c0_i32, %c0_i32_0 : i32, i32, i32
  }
  func.func @transform_1(%arg0: i32) -> (i32, i32) {
    %c0_i32 = arith.constant 0 : i32
    %c0_i32_0 = arith.constant 0 : i32
    %c0_i32_1 = arith.constant 0 : i32
    return %c0_i32, %c0_i32_0 : i32, i32
  }
  func.func @transform_2(%arg0: i32) -> (i32, i32) {
    %c0_i32 = arith.constant 0 : i32
    %c0_i32_0 = arith.constant 0 : i32
    %c0_i32_1 = arith.constant 0 : i32
    return %c0_i32, %c0_i32_0 : i32, i32
  }
  func.func @transform_3(%arg0: i32) -> (i32, i32) {
    %c0_i32 = arith.constant 0 : i32
    %c0_i32_0 = arith.constant 0 : i32
    %c0_i32_1 = arith.constant 0 : i32
    return %c0_i32, %c0_i32_0 : i32, i32
  }
  func.func @transform_4(%arg0: i32) -> (i32, i32) {
    %c0_i32 = arith.constant 0 : i32
    %c0_i32_0 = arith.constant 0 : i32
    %c0_i32_1 = arith.constant 0 : i32
    return %c0_i32, %c0_i32_0 : i32, i32
  }
  func.func @transform_5(%arg0: i32) -> (i32, i32) {
    %c0_i32 = arith.constant 0 : i32
    %c0_i32_0 = arith.constant 0 : i32
    %c0_i32_1 = arith.constant 0 : i32
    return %c0_i32, %c0_i32_0 : i32, i32
  }
  func.func @transform_6(%arg0: i32) -> (i32, i32) {
    %c0_i32 = arith.constant 0 : i32
    %c0_i32_0 = arith.constant 0 : i32
    %c0_i32_1 = arith.constant 0 : i32
    return %c0_i32, %c0_i32_0 : i32, i32
  }
  func.func @transform_7(%arg0: i32) -> (i32, i32, i32) {
    %c0_i32 = arith.constant 0 : i32
    %c0_i32_0 = arith.constant 0 : i32
    %c0_i32_1 = arith.constant 0 : i32
    return %arg0, %c0_i32, %c0_i32_0 : i32, i32, i32
  }
}

</mosaic_0001>

<llo_original>
// kernel: gated_sf_attention_block.2
$region0: #{gated_sf_attention_block.2}
  #allocation0 [shape = 'u32[]', space=smem, size = 0x4, offset = 0x4, fixed_abs, tag = 'smem constant byte address 0x4 - core index']
  #allocation1 [shape = 'u32[144,128]{1,0:T(1,128)}', space=vmem, size = 0x12000, scoped, tag = 'internal scratch']
  %s0 = inlined_call_operand.vmem [shape: f32[3,2,8,128], index: 0, kind: input, shape index: {}]
  %s1 = inlined_call_operand.vmem [shape: f32[3,1,128], index: 1, kind: input, shape index: {}]
  %s2 = inlined_call_operand.vmem [shape: f32[3,1,128], index: 2, kind: input, shape index: {}]
  %s3 = inlined_call_operand.vmem [shape: bf16[3,128,384], index: 3, kind: input, shape index: {}]
  %s4 = inlined_call_operand.vmem [shape: f32[3,1,384], index: 4, kind: input, shape index: {}]
  %s5 = inlined_call_operand.vmem [shape: bf16[3,128,128], index: 5, kind: input, shape index: {}]
  %s6 = inlined_call_operand.vmem [shape: f32[3,1,128], index: 6, kind: input, shape index: {}]
  %s7 = inlined_call_operand.vmem [shape: f32[3,2,8,128], index: 7, kind: output, shape index: {}]
  %s8 = sld [smem:[#allocation0]]
  $region61: #{gated_sf_attention_block.2} parent=0
    _
  %s10 = ssub.s32 1, %s8
  %s11 = scalar_select 0, %s10, %s8
  loop: start=0, step=1, limit=5
  $region2: #{gated_sf_attention_block.2} parent=0 // loop_pre_header
    _
  $region3: #{gated_sf_attention_block.2} parent=0 // loop_header
    %s13 = sphi 0, %s17
    %p14 = scmp.ge.s32.totalorder %s13, 5
    %s20 = sphi 0, %s32
    %s21 = sphi 0, %s28
    %s22 = sphi 0, %s20
    %s23 = sphi 0, %s21
    %s24 = sphi 0, %s22
    %s25 = sphi 0, %s23
    %s37 = sphi 0, %s39
    %s40 = sphi 0, %s37
    %s41 = sphi 0, %s40
    %s57 = sphi 0, %s41
    %s63 = sphi 0, %s65
    %s66 = sphi 0, %s63
    %s67 = sphi 0, %s66
    %s83 = sphi 0, %s67
    %s89 = sphi 0, %s91
    %s92 = sphi 0, %s89
    %s93 = sphi 0, %s92
    %s109 = sphi 0, %s93
    %s115 = sphi 0, %s117
    %s118 = sphi 0, %s115
    %s119 = sphi 0, %s118
    %s135 = sphi 0, %s119
    %s141 = sphi 0, %s143
    %s144 = sphi 0, %s141
    %s145 = sphi 0, %s144
    %s161 = sphi 0, %s145
    %s167 = sphi 0, %s169
    %s170 = sphi 0, %s167
    %s171 = sphi 0, %s170
    %s187 = sphi 0, %s171
    %s193 = sphi 0, %s195
    %s196 = sphi 0, %s193
    %s197 = sphi 0, %s196
    %s213 = sphi 0, %s197
    %s221 = sphi 0, %s223
    %s224 = sphi 0, %s221
    %s225 = sphi 0, %s224
    %s241 = sphi 0, %s225
  $region4: #{gated_sf_attention_block.2} parent=0 // loop_header_branch
    %16 = sbr.rel (%p14) target = $region8
  $region5: #{gated_sf_attention_block.2} parent=0 // loop_body
    %s18 = ssub.s32 %s13, 1
    %s19 = ssub.s32 %s13, 2
    %s26 = sadd.s32 1, %s21
    %p27 = scmp.ge.s32.totalorder %s26, 1
    %s28 = scalar_select %p27, 0, %s26
    %s29 = sadd.s32 1, %s20
    %s30 = scalar_select %p27, %s29, %s20
    %p31 = scmp.ge.s32.totalorder %s30, 3
    %s32 = scalar_select %p31, 0, %s30
    %s33 = ssub.s32 %s20, %s32
    %s34 = ssub.s32 %s21, %s28
    %s35 = sor.u32 %s33, %s34
    %p36 = scmp.eq.s32.totalorder %s35, 0
    %s38 = sadd.s32 %s37, 1
    %s39 = scalar_select %p36, %s37, %s38
    %p42 = pneg %p36
    %p43 = scmp.eq.s32.totalorder %s13, 2
    %p44 = por %p42, %p43
    %p45 = scmp.ne.s32.totalorder %s37, %s40
    %p46 = scmp.eq.s32.totalorder %s13, 0
    %p47 = por %p45, %p46
    %p48 = scmp.ne.s32.totalorder %s37, %s40
    %p49 = scmp.eq.s32.totalorder %s18, 2
    %p50 = por %p48, %p49
    %p51 = scmp.ne.s32.totalorder %s40, %s41
    %p52 = scmp.eq.s32.totalorder %s18, 0
    %p53 = por %p51, %p52
    %p54 = scmp.ne.s32.totalorder %s40, %s41
    %p55 = scmp.eq.s32.totalorder %s19, 2
    %p56 = por %p54, %p55
    %p58 = scmp.ne.s32.totalorder %s41, %s57
    %p59 = scmp.eq.s32.totalorder %s19, 0
    %p60 = por %p58, %p59
    %s61 = ssub.s32 %s20, %s32
    %p62 = scmp.eq.s32.totalorder %s61, 0
    %s64 = sadd.s32 %s63, 1
    %s65 = scalar_select %p62, %s63, %s64
    %p68 = pneg %p62
    %p69 = scmp.eq.s32.totalorder %s13, 2
    %p70 = por %p68, %p69
    %p71 = scmp.ne.s32.totalorder %s63, %s66
    %p72 = scmp.eq.s32.totalorder %s13, 0
    %p73 = por %p71, %p72
    %p74 = scmp.ne.s32.totalorder %s63, %s66
    %p75 = scmp.eq.s32.totalorder %s18, 2
    %p76 = por %p74, %p75
    %p77 = scmp.ne.s32.totalorder %s66, %s67
    %p78 = scmp.eq.s32.totalorder %s18, 0
    %p79 = por %p77, %p78
    %p80 = scmp.ne.s32.totalorder %s66, %s67
    %p81 = scmp.eq.s32.totalorder %s19, 2
    %p82 = por %p80, %p81
    %p84 = scmp.ne.s32.totalorder %s67, %s83
    %p85 = scmp.eq.s32.totalorder %s19, 0
    %p86 = por %p84, %p85
    %s87 = ssub.s32 %s20, %s32
    %p88 = scmp.eq.s32.totalorder %s87, 0
    %s90 = sadd.s32 %s89, 1
    %s91 = scalar_select %p88, %s89, %s90
    %p94 = pneg %p88
    %p95 = scmp.eq.s32.totalorder %s13, 2
    %p96 = por %p94, %p95
    %p97 = scmp.ne.s32.totalorder %s89, %s92
    %p98 = scmp.eq.s32.totalorder %s13, 0
    %p99 = por %p97, %p98
    %p100 = scmp.ne.s32.totalorder %s89, %s92
    %p101 = scmp.eq.s32.totalorder %s18, 2
    %p102 = por %p100, %p101
    %p103 = scmp.ne.s32.totalorder %s92, %s93
    %p104 = scmp.eq.s32.totalorder %s18, 0
    %p105 = por %p103, %p104
    %p106 = scmp.ne.s32.totalorder %s92, %s93
    %p107 = scmp.eq.s32.totalorder %s19, 2
    %p108 = por %p106, %p107
    %p110 = scmp.ne.s32.totalorder %s93, %s109
    %p111 = scmp.eq.s32.totalorder %s19, 0
    %p112 = por %p110, %p111
    %s113 = ssub.s32 %s20, %s32
    %p114 = scmp.eq.s32.totalorder %s113, 0
    %s116 = sadd.s32 %s115, 1
    %s117 = scalar_select %p114, %s115, %s116
    %p120 = pneg %p114
    %p121 = scmp.eq.s32.totalorder %s13, 2
    %p122 = por %p120, %p121
    %p123 = scmp.ne.s32.totalorder %s115, %s118
    %p124 = scmp.eq.s32.totalorder %s13, 0
    %p125 = por %p123, %p124
    %p126 = scmp.ne.s32.totalorder %s115, %s118
    %p127 = scmp.eq.s32.totalorder %s18, 2
    %p128 = por %p126, %p127
    %p129 = scmp.ne.s32.totalorder %s118, %s119
    %p130 = scmp.eq.s32.totalorder %s18, 0
    %p131 = por %p129, %p130
    %p132 = scmp.ne.s32.totalorder %s118, %s119
    %p133 = scmp.eq.s32.totalorder %s19, 2
    %p134 = por %p132, %p133
    %p136 = scmp.ne.s32.totalorder %s119, %s135
    %p137 = scmp.eq.s32.totalorder %s19, 0
    %p138 = por %p136, %p137
    %s139 = ssub.s32 %s20, %s32
    %p140 = scmp.eq.s32.totalorder %s139, 0
    %s142 = sadd.s32 %s141, 1
    %s143 = scalar_select %p140, %s141, %s142
    %p146 = pneg %p140
    %p147 = scmp.eq.s32.totalorder %s13, 2
    %p148 = por %p146, %p147
    %p149 = scmp.ne.s32.totalorder %s141, %s144
    %p150 = scmp.eq.s32.totalorder %s13, 0
    %p151 = por %p149, %p150
    %p152 = scmp.ne.s32.totalorder %s141, %s144
    %p153 = scmp.eq.s32.totalorder %s18, 2
    %p154 = por %p152, %p153
    %p155 = scmp.ne.s32.totalorder %s144, %s145
    %p156 = scmp.eq.s32.totalorder %s18, 0
    %p157 = por %p155, %p156
    %p158 = scmp.ne.s32.totalorder %s144, %s145
    %p159 = scmp.eq.s32.totalorder %s19, 2
    %p160 = por %p158, %p159
    %p162 = scmp.ne.s32.totalorder %s145, %s161
    %p163 = scmp.eq.s32.totalorder %s19, 0
    %p164 = por %p162, %p163
    %s165 = ssub.s32 %s20, %s32
    %p166 = scmp.eq.s32.totalorder %s165, 0
    %s168 = sadd.s32 %s167, 1
    %s169 = scalar_select %p166, %s167, %s168
    %p172 = pneg %p166
    %p173 = scmp.eq.s32.totalorder %s13, 2
    %p174 = por %p172, %p173
    %p175 = scmp.ne.s32.totalorder %s167, %s170
    %p176 = scmp.eq.s32.totalorder %s13, 0
    %p177 = por %p175, %p176
    %p178 = scmp.ne.s32.totalorder %s167, %s170
    %p179 = scmp.eq.s32.totalorder %s18, 2
    %p180 = por %p178, %p179
    %p181 = scmp.ne.s32.totalorder %s170, %s171
    %p182 = scmp.eq.s32.totalorder %s18, 0
    %p183 = por %p181, %p182
    %p184 = scmp.ne.s32.totalorder %s170, %s171
    %p185 = scmp.eq.s32.totalorder %s19, 2
    %p186 = por %p184, %p185
    %p188 = scmp.ne.s32.totalorder %s171, %s187
    %p189 = scmp.eq.s32.totalorder %s19, 0
    %p190 = por %p188, %p189
    %s191 = ssub.s32 %s20, %s32
    %p192 = scmp.eq.s32.totalorder %s191, 0
    %s194 = sadd.s32 %s193, 1
    %s195 = scalar_select %p192, %s193, %s194
    %p198 = pneg %p192
    %p199 = scmp.eq.s32.totalorder %s13, 2
    %p200 = por %p198, %p199
    %p201 = scmp.ne.s32.totalorder %s193, %s196
    %p202 = scmp.eq.s32.totalorder %s13, 0
    %p203 = por %p201, %p202
    %p204 = scmp.ne.s32.totalorder %s193, %s196
    %p205 = scmp.eq.s32.totalorder %s18, 2
    %p206 = por %p204, %p205
    %p207 = scmp.ne.s32.totalorder %s196, %s197
    %p208 = scmp.eq.s32.totalorder %s18, 0
    %p209 = por %p207, %p208
    %p210 = scmp.ne.s32.totalorder %s196, %s197
    %p211 = scmp.eq.s32.totalorder %s19, 2
    %p212 = por %p210, %p211
    %p214 = scmp.ne.s32.totalorder %s197, %s213
    %p215 = scmp.eq.s32.totalorder %s19, 0
    %p216 = por %p214, %p215
    %s217 = ssub.s32 %s20, %s32
    %s218 = ssub.s32 %s21, %s28
    %s219 = sor.u32 %s217, %s218
    %p220 = scmp.eq.s32.totalorder %s219, 0
    %s222 = sadd.s32 %s221, 1
    %s223 = scalar_select %p220, %s221, %s222
    %p226 = pneg %p220
    %p227 = scmp.eq.s32.totalorder %s13, 2
    %p228 = por %p226, %p227
    %p229 = scmp.ne.s32.totalorder %s221, %s224
    %p230 = scmp.eq.s32.totalorder %s13, 0
    %p231 = por %p229, %p230
    %p232 = scmp.ne.s32.totalorder %s221, %s224
    %p233 = scmp.eq.s32.totalorder %s18, 2
    %p234 = por %p232, %p233
    %p235 = scmp.ne.s32.totalorder %s224, %s225
    %p236 = scmp.eq.s32.totalorder %s18, 0
    %p237 = por %p235, %p236
    %p238 = scmp.ne.s32.totalorder %s224, %s225
    %p239 = scmp.eq.s32.totalorder %s19, 2
    %p240 = por %p238, %p239
    %p242 = scmp.ne.s32.totalorder %s225, %s241
    %p243 = scmp.eq.s32.totalorder %s19, 0
    %p244 = por %p242, %p243
    %p245 = scmp.le.s32.totalorder 1, %s13
    %p246 = scmp.lt.s32.totalorder %s13, 4
    %p247 = pnand %p245, %p246
    %p248 = pneg %p247
    // Predicated region
    $region9: #{gated_sf_attention_block.2} parent=5 // pred_check
      _
    $region10: #{gated_sf_attention_block.2} parent=5 // pred_check_branch
      %250 = sbr.rel (%p247) target = $region12
    $region11: #{gated_sf_attention_block.2} parent=5 // pred_region
      %s251 = ssub.s32 %s13, 1
    $region12: #{gated_sf_attention_block.2} parent=5 // pred_fallthru
      _
    %p252 = scmp.lt.s32.totalorder %s13, 3
    // Predicated region
    $region13: #{gated_sf_attention_block.2} parent=5 // pred_check
      %p253 = pneg %p252
    $region14: #{gated_sf_attention_block.2} parent=5 // pred_check_branch
      %255 = sbr.rel (%p253) target = $region16
    $region15: #{gated_sf_attention_block.2} parent=5 // pred_region
      // Predicated region
      $region17: #{gated_sf_attention_block.2} parent=15 // pred_check
        %p256 = pneg %p47
      $region18: #{gated_sf_attention_block.2} parent=15 // pred_check_branch
        %258 = sbr.rel (%p256) target = $region20
      $region19: #{gated_sf_attention_block.2} parent=15 // pred_region
        %s259 = smul.u32 2, %s21
        %p260 = scmp.lt.s32.totalorder %s20, 2
        %s261 = scalar_select %p260, %s20, 2
        %p262 = scmp.lt.s32.totalorder %s259, 1
        %s263 = scalar_select %p262, %s259, 1
        %s264 = smul.addr %s261, 2
        %s265 = sadd.s32 %s263, %s264
        %s266 = smul.addr %s265, 8
        %s267 = scalar_lea.vmem %s0, %s266
        %s268 = smul.u32 2, %s21
      $region20: #{gated_sf_attention_block.2} parent=15 // pred_fallthru
        _
      // Predicated region
      $region21: #{gated_sf_attention_block.2} parent=15 // pred_check
        %p269 = pneg %p73
      $region22: #{gated_sf_attention_block.2} parent=15 // pred_check_branch
        %271 = sbr.rel (%p269) target = $region24
      $region23: #{gated_sf_attention_block.2} parent=15 // pred_region
        %p272 = scmp.lt.s32.totalorder %s20, 2
        %s273 = scalar_select %p272, %s20, 2
        %s274 = scalar_lea.vmem %s1, %s273
      $region24: #{gated_sf_attention_block.2} parent=15 // pred_fallthru
        _
      // Predicated region
      $region25: #{gated_sf_attention_block.2} parent=15 // pred_check
        %p275 = pneg %p99
      $region26: #{gated_sf_attention_block.2} parent=15 // pred_check_branch
        %277 = sbr.rel (%p275) target = $region28
      $region27: #{gated_sf_attention_block.2} parent=15 // pred_region
        %p278 = scmp.lt.s32.totalorder %s20, 2
        %s279 = scalar_select %p278, %s20, 2
        %s280 = scalar_lea.vmem %s2, %s279
      $region28: #{gated_sf_attention_block.2} parent=15 // pred_fallthru
        _
      // Predicated region
      $region29: #{gated_sf_attention_block.2} parent=15 // pred_check
        %p281 = pneg %p125
      $region30: #{gated_sf_attention_block.2} parent=15 // pred_check_branch
        %283 = sbr.rel (%p281) target = $region32
      $region31: #{gated_sf_attention_block.2} parent=15 // pred_region
        %p284 = scmp.lt.s32.totalorder %s20, 2
        %s285 = scalar_select %p284, %s20, 2
        %s286 = smul.addr %s285, 48
        %s287 = smul.addr %s286, 4
        %s288 = scalar_lea.vmem %s3, %s287
      $region32: #{gated_sf_attention_block.2} parent=15 // pred_fallthru
        _
      // Predicated region
      $region33: #{gated_sf_attention_block.2} parent=15 // pred_check
        %p289 = pneg %p151
      $region34: #{gated_sf_attention_block.2} parent=15 // pred_check_branch
        %291 = sbr.rel (%p289) target = $region36
      $region35: #{gated_sf_attention_block.2} parent=15 // pred_region
        %p292 = scmp.lt.s32.totalorder %s20, 2
        %s293 = scalar_select %p292, %s20, 2
        %s294 = smul.addr %s293, 3
        %s295 = scalar_lea.vmem %s4, %s294
      $region36: #{gated_sf_attention_block.2} parent=15 // pred_fallthru
        _
      // Predicated region
      $region37: #{gated_sf_attention_block.2} parent=15 // pred_check
        %p296 = pneg %p177
      $region38: #{gated_sf_attention_block.2} parent=15 // pred_check_branch
        %298 = sbr.rel (%p296) target = $region40
      $region39: #{gated_sf_attention_block.2} parent=15 // pred_region
        %p299 = scmp.lt.s32.totalorder %s20, 2
        %s300 = scalar_select %p299, %s20, 2
        %s301 = smul.addr %s300, 16
        %s302 = smul.addr %s301, 4
        %s303 = scalar_lea.vmem %s5, %s302
      $region40: #{gated_sf_attention_block.2} parent=15 // pred_fallthru
        _
      // Predicated region
      $region41: #{gated_sf_attention_block.2} parent=15 // pred_check
        %p304 = pneg %p203
      $region42: #{gated_sf_attention_block.2} parent=15 // pred_check_branch
        %306 = sbr.rel (%p304) target = $region44
      $region43: #{gated_sf_attention_block.2} parent=15 // pred_region
        %p307 = scmp.lt.s32.totalorder %s20, 2
        %s308 = scalar_select %p307, %s20, 2
        %s309 = scalar_lea.vmem %s6, %s308
      $region44: #{gated_sf_attention_block.2} parent=15 // pred_fallthru
        _
    $region16: #{gated_sf_attention_block.2} parent=5 // pred_fallthru
      _
    %p310 = scmp.le.s32.totalorder 1, %s13
    %p311 = scmp.lt.s32.totalorder %s13, 4
    %p312 = pnand %p310, %p311
    %p313 = pneg %p312
    // Predicated region
    $region45: #{gated_sf_attention_block.2} parent=5 // pred_check
      _
    $region46: #{gated_sf_attention_block.2} parent=5 // pred_check_branch
      %315 = sbr.rel (%p312) target = $region48
    $region47: #{gated_sf_attention_block.2} parent=5 // pred_region
      %s316 = ssub.s32 %s13, 1
      %s317 = smul.u32 2, %s23
      %p318 = scmp.lt.s32.totalorder %s22, 2
      %s319 = scalar_select %p318, %s22, 2
      %p320 = scmp.lt.s32.totalorder %s317, 1
      %s321 = scalar_select %p320, %s317, 1
      %s322 = smul.addr %s319, 2
      %s323 = sadd.s32 %s321, %s322
      %s324 = smul.addr %s323, 8
      %s325 = scalar_lea.vmem %s0, %s324
      %p326 = pneg %p53
      %p327 = pneg %p50
      %p328 = scmp.lt.s32.totalorder %s22, 2
      %s329 = scalar_select %p328, %s22, 2
      %s330 = scalar_lea.vmem %s1, %s329
      %p331 = pneg %p79
      %p332 = pneg %p76
      %p333 = scmp.lt.s32.totalorder %s22, 2
      %s334 = scalar_select %p333, %s22, 2
      %s335 = scalar_lea.vmem %s2, %s334
      %p336 = pneg %p105
      %p337 = pneg %p102
      %p338 = scmp.lt.s32.totalorder %s22, 2
      %s339 = scalar_select %p338, %s22, 2
      %s340 = smul.addr %s339, 48
      %s341 = smul.addr %s340, 4
      %s342 = scalar_lea.vmem %s3, %s341
      %p343 = pneg %p131
      %p344 = pneg %p128
      %p345 = scmp.lt.s32.totalorder %s22, 2
      %s346 = scalar_select %p345, %s22, 2
      %s347 = smul.addr %s346, 3
      %s348 = scalar_lea.vmem %s4, %s347
      %p349 = pneg %p157
      %p350 = pneg %p154
      %p351 = scmp.lt.s32.totalorder %s22, 2
      %s352 = scalar_select %p351, %s22, 2
      %s353 = smul.addr %s352, 16
      %s354 = smul.addr %s353, 4
      %s355 = scalar_lea.vmem %s5, %s354
      %p356 = pneg %p183
      %p357 = pneg %p180
      %p358 = scmp.lt.s32.totalorder %s22, 2
      %s359 = scalar_select %p358, %s22, 2
      %s360 = scalar_lea.vmem %s6, %s359
      %p361 = pneg %p209
      %p362 = pneg %p206
      %p363 = pneg %p237
      %p364 = pneg %p234
      %s365 = smul.u32 2, %s23
      %p366 = scmp.lt.s32.totalorder %s22, 2
      %s367 = scalar_select %p366, %s22, 2
      %p368 = scmp.lt.s32.totalorder %s365, 1
      %s369 = scalar_select %p368, %s365, 1
      %s370 = smul.addr %s367, 2
      %s371 = sadd.s32 %s369, %s370
      %s372 = smul.addr %s371, 8
      %s373 = scalar_lea.vmem %s7, %s372
      %s374 = smul.u32 2, %s23
      %p375 = scmp.lt.s32.totalorder %s22, 2
      %s376 = scalar_select %p375, %s22, 2
      %p377 = scmp.lt.s32.totalorder %s374, 1
      %s378 = scalar_select %p377, %s374, 1
      %s379 = smul.addr %s376, 2
      %s380 = sadd.s32 %s378, %s379
      %s381 = smul.addr %s380, 8
      %s382 = scalar_lea.vmem %s0, %s381
      %s383 = smul.u32 2, %s23
      %p384 = scmp.lt.s32.totalorder %s22, 2
      %s385 = scalar_select %p384, %s22, 2
      %s386 = scalar_lea.vmem %s1, %s385
      %p387 = scmp.lt.s32.totalorder %s22, 2
      %s388 = scalar_select %p387, %s22, 2
      %s389 = scalar_lea.vmem %s2, %s388
      %p390 = scmp.lt.s32.totalorder %s22, 2
      %s391 = scalar_select %p390, %s22, 2
      %s392 = smul.addr %s391, 48
      %s393 = smul.addr %s392, 4
      %s394 = scalar_lea.vmem %s3, %s393
      %p395 = scmp.lt.s32.totalorder %s22, 2
      %s396 = scalar_select %p395, %s22, 2
      %s397 = smul.addr %s396, 3
      %s398 = scalar_lea.vmem %s4, %s397
      %p399 = scmp.lt.s32.totalorder %s22, 2
      %s400 = scalar_select %p399, %s22, 2
      %s401 = smul.addr %s400, 16
      %s402 = smul.addr %s401, 4
      %s403 = scalar_lea.vmem %s5, %s402
      %p404 = scmp.lt.s32.totalorder %s22, 2
      %s405 = scalar_select %p404, %s22, 2
      %s406 = scalar_lea.vmem %s6, %s405
      %s407 = smul.u32 2, %s23
      %p408 = scmp.lt.s32.totalorder %s22, 2
      %s409 = scalar_select %p408, %s22, 2
      %p410 = scmp.lt.s32.totalorder %s407, 1
      %s411 = scalar_select %p410, %s407, 1
      %s412 = smul.addr %s409, 2
      %s413 = sadd.s32 %s411, %s412
      %s414 = smul.addr %s413, 8
      %s415 = scalar_lea.vmem %s7, %s414
      %s416 = smul.u32 2, %s23
      %v418 = vld [vmem:[%s382] sm:$0xff]
      %v419 = vld [vmem:[%s382 + $0x8] sm:$0xff]
      %v420 = vld [vmem:[%s386] sm:$0x1]
      %v421 = vld [vmem:[%s389] sm:$0x1]
      %422 = vadd.xlane.f32.xlu0 %v418
      %v423 = vpop.xlane.xlu0 %422
      %424 = vadd.xlane.f32.xlu0 %v419
      %v425 = vpop.xlane.xlu0 %424
      %v426 = vrcp.pop 128.0
      %v427 = vmul.f32 %v423, %v426
      %v428 = vmul.f32 %v425, %v426
      %v429 = vsub.f32 %v418, %v427
      %v430 = vsub.f32 %v419, %v428
      %v431 = vmul.f32 %v429, %v429
      %v432 = vmul.f32 %v430, %v430
      %433 = vadd.xlane.f32.xlu0 %v431
      %v434 = vpop.xlane.xlu0 %433
      %435 = vadd.xlane.f32.xlu0 %v432
      %v436 = vpop.xlane.xlu0 %435
      %v437 = vmul.f32 %v434, %v426
      %v438 = vmul.f32 %v436, %v426
      %v439 = vadd.f32 %v437, 1e-05
      %v440 = vadd.f32 %v438, 1e-05
      %v441 = vrsqrt.pop %v439
      %v442 = vrsqrt.pop %v440
      %v443 = vmul.f32 %v429, %v441
      %v444 = vmul.f32 %v430, %v442
      %v446 = vlaneseq
      %v447 = vshrl.u32 %v446, 7
      %v448 = vsub.s32 0, %v447
      %v449 = vrot.slane %v420, %v448
      %v451 = vmul.f32 %v443, %v449
      %v452 = vmul.f32 %v444, %v449
      %v454 = vlaneseq
      %v455 = vshrl.u32 %v454, 7
      %v456 = vsub.s32 0, %v455
      %v457 = vrot.slane %v421, %v456
      %v459 = vadd.f32 %v451, %v457
      %v460 = vadd.f32 %v452, %v457
      %v461 = vpack.c.bf16 %v460, %v459
      %v462 = vld [vmem:[%s394] sm:$0xff]
      %v463 = vld [vmem:[%s394 + $0x8] sm:$0xf]
      %v464 = vld [vmem:[%s394 + $0xc] sm:$0xff]
      %v465 = vld [vmem:[%s394 + $0x14] sm:$0xf]
      %v466 = vld [vmem:[%s394 + $0x18] sm:$0xff]
      %v467 = vld [vmem:[%s394 + $0x20] sm:$0xf]
      %v468 = vld [vmem:[%s394 + $0x24] sm:$0xff]
      %v469 = vld [vmem:[%s394 + $0x2c] sm:$0xf]
      %v470 = vld [vmem:[%s394 + $0x30] sm:$0xff]
      %v471 = vld [vmem:[%s394 + $0x38] sm:$0xf]
      %v472 = vld [vmem:[%s394 + $0x3c] sm:$0xff]
      %v473 = vld [vmem:[%s394 + $0x44] sm:$0xf]
      %v474 = vld [vmem:[%s394 + $0x48] sm:$0xff]
      %v475 = vld [vmem:[%s394 + $0x50] sm:$0xf]
      %v476 = vld [vmem:[%s394 + $0x54] sm:$0xff]
      %v477 = vld [vmem:[%s394 + $0x5c] sm:$0xf]
      %v478 = vld [vmem:[%s394 + $0x60] sm:$0xff]
      %v479 = vld [vmem:[%s394 + $0x68] sm:$0xf]
      %v480 = vld [vmem:[%s394 + $0x6c] sm:$0xff]
      %v481 = vld [vmem:[%s394 + $0x74] sm:$0xf]
      %v482 = vld [vmem:[%s394 + $0x78] sm:$0xff]
      %v483 = vld [vmem:[%s394 + $0x80] sm:$0xf]
      %v484 = vld [vmem:[%s394 + $0x84] sm:$0xff]
      %v485 = vld [vmem:[%s394 + $0x8c] sm:$0xf]
      %v486 = vld [vmem:[%s394 + $0x90] sm:$0xff]
      %v487 = vld [vmem:[%s394 + $0x98] sm:$0xf]
      %v488 = vld [vmem:[%s394 + $0x9c] sm:$0xff]
      %v489 = vld [vmem:[%s394 + $0xa4] sm:$0xf]
      %v490 = vld [vmem:[%s394 + $0xa8] sm:$0xff]
      %v491 = vld [vmem:[%s394 + $0xb0] sm:$0xf]
      %v492 = vld [vmem:[%s394 + $0xb4] sm:$0xff]
      %v493 = vld [vmem:[%s394 + $0xbc] sm:$0xf]
      %v494 = vld [vmem:[%s398] sm:$0x7]
      %v496 = vlaneseq
      %v497 = vshrl.u32 %v496, 7
      %v498 = vsub.s32 0, %v497
      %v499 = vrot.slane %v494, %v498
      %v500 = vlaneseq
      %v501 = vshrl.u32 %v500, 7
      %v502 = vsub.s32 1, %v501
      %v503 = vrot.slane %v494, %v502
      %v504 = vlaneseq
      %v505 = vshrl.u32 %v504, 7
      %v506 = vsub.s32 2, %v505
      %v507 = vrot.slane %v494, %v506
      %v543 = vunpack.c.l.b16 %v462
      %v544 = vunpack.c.h.b16 %v462
      %v545 = vunpack.c.l.b16 %v463
      %v546 = vunpack.c.l.b16 %v464
      %v547 = vunpack.c.h.b16 %v464
      %v548 = vunpack.c.l.b16 %v465
      %v549 = vunpack.c.l.b16 %v466
      %v550 = vunpack.c.h.b16 %v466
      %v551 = vunpack.c.l.b16 %v467
      %v552 = vunpack.c.l.b16 %v468
      %v553 = vunpack.c.h.b16 %v468
      %v554 = vunpack.c.l.b16 %v469
      %v555 = vunpack.c.l.b16 %v470
      %v556 = vunpack.c.h.b16 %v470
      %v557 = vunpack.c.l.b16 %v471
      %v558 = vunpack.c.l.b16 %v472
      %v559 = vunpack.c.h.b16 %v472
      %v560 = vunpack.c.l.b16 %v473
      %v561 = vunpack.c.l.b16 %v474
      %v562 = vunpack.c.h.b16 %v474
      %v563 = vunpack.c.l.b16 %v475
      %v564 = vunpack.c.l.b16 %v476
      %v565 = vunpack.c.h.b16 %v476
      %v566 = vunpack.c.l.b16 %v477
      %v567 = vunpack.c.l.b16 %v478
      %v568 = vunpack.c.h.b16 %v478
      %v569 = vunpack.c.l.b16 %v479
      %v570 = vunpack.c.l.b16 %v480
      %v571 = vunpack.c.h.b16 %v480
      %v572 = vunpack.c.l.b16 %v481
      %v573 = vunpack.c.l.b16 %v482
      %v574 = vunpack.c.h.b16 %v482
      %v575 = vunpack.c.l.b16 %v483
      %v576 = vunpack.c.l.b16 %v484
      %v577 = vunpack.c.h.b16 %v484
      %v578 = vunpack.c.l.b16 %v485
      %v579 = vunpack.c.l.b16 %v486
      %v580 = vunpack.c.h.b16 %v486
      %v581 = vunpack.c.l.b16 %v487
      %v582 = vunpack.c.l.b16 %v488
      %v583 = vunpack.c.h.b16 %v488
      %v584 = vunpack.c.l.b16 %v489
      %v585 = vunpack.c.l.b16 %v490
      %v586 = vunpack.c.h.b16 %v490
      %v587 = vunpack.c.l.b16 %v491
      %v588 = vunpack.c.l.b16 %v492
      %v589 = vunpack.c.h.b16 %v492
      %v590 = vunpack.c.l.b16 %v493
      %v591 = vpack.c.b16 %v546, %v543
      %v592 = vpack.c.b16 %v547, %v544
      %v593 = vpack.c.b16 %v548, %v545
      %v594 = vpack.c.b16 %v552, %v549
      %v595 = vpack.c.b16 %v553, %v550
      %v596 = vpack.c.b16 %v554, %v551
      %v597 = vpack.c.b16 %v558, %v555
      %v598 = vpack.c.b16 %v559, %v556
      %v599 = vpack.c.b16 %v560, %v557
      %v600 = vpack.c.b16 %v564, %v561
      %v601 = vpack.c.b16 %v565, %v562
      %v602 = vpack.c.b16 %v566, %v563
      %v603 = vpack.c.b16 %v570, %v567
      %v604 = vpack.c.b16 %v571, %v568
      %v605 = vpack.c.b16 %v572, %v569
      %v606 = vpack.c.b16 %v576, %v573
      %v607 = vpack.c.b16 %v577, %v574
      %v608 = vpack.c.b16 %v578, %v575
      %v609 = vpack.c.b16 %v582, %v579
      %v610 = vpack.c.b16 %v583, %v580
      %v611 = vpack.c.b16 %v584, %v581
      %v612 = vpack.c.b16 %v588, %v585
      %v613 = vpack.c.b16 %v589, %v586
      %v614 = vpack.c.b16 %v590, %v587
      %639 = vmatprep.subr.bf16.mxu0 %v613
      %640 = vmatpush1.bf16.msra.mxu0 %v612
      %641 = vmatprep.subr.bf16.mxu0 %v610
      %642 = vmatpush1.bf16.msra.mxu0 %v609
      %643 = vmatprep.subr.bf16.mxu0 %v607
      %644 = vmatpush1.bf16.msra.mxu0 %v606
      %645 = vmatprep.subr.bf16.mxu0 %v604
      %646 = vmatpush1.bf16.msra.mxu0 %v603
      %647 = vmatprep.subr.bf16.mxu0 %v601
      %648 = vmatpush1.bf16.msra.mxu0 %v600
      %649 = vmatprep.subr.bf16.mxu0 %v598
      %650 = vmatpush1.bf16.msra.mxu0 %v597
      %651 = vmatprep.subr.bf16.mxu0 %v595
      %652 = vmatpush1.bf16.msra.mxu0 %v594
      %653 = vmatprep.subr.bf16.mxu0 %v592
      %654 = vmatpush1.bf16.msra.mxu0 %v591
      %655 = vmatprep.subr.bf16.mxu0 0
      %656 = vmatpush2.bf16.msra.mxu0 0
      %657 = vmatprep.subr.bf16.mxu0 0
      %658 = vmatpush2.bf16.msra.mxu0 0
      %659 = vmatprep.subr.bf16.mxu0 0
      %660 = vmatpush2.bf16.msra.mxu0 0
      %661 = vmatprep.subr.bf16.mxu0 0
      %662 = vmatpush2.bf16.msra.mxu0 0
      %663 = vmatprep.subr.bf16.mxu0 0
      %664 = vmatpush2.bf16.msra.mxu0 0
      %665 = vmatprep.subr.bf16.mxu0 0
      %666 = vmatpush2.bf16.msra.mxu0 0
      %667 = vmatprep.subr.bf16.mxu0 0
      %668 = vmatpush2.bf16.msra.mxu0 0
      %669 = vmatprep.subr.bf16.mxu0 0
      %670 = vmatpush2.bf16.msra.mxu0 0
      %671 = vmatprep.mubr.bf16.mxu0 0
      %672 = vmatmul.mubr.bf16.gmra.mxu0 %v461
      %v673 = vpop.f32.mrf.mxu0
      %v674 = vadd.f32 %v499, %v673
      %v675 = vpop.f32.mrf.mxu0
      %v676 = vadd.f32 %v503, %v675
      %v677 = vpop.f32.mrf.mxu0
      %v678 = vadd.f32 %v499, %v677
      %v679 = vpop.f32.mrf.mxu0
      %v680 = vadd.f32 %v503, %v679
      %681 = vdwg.mxu0
      %682 = vmatprep.subr.bf16.mxu0 0
      %683 = vmatpush1.bf16.msra.mxu0 %v614
      %684 = vmatprep.subr.bf16.mxu0 0
      %685 = vmatpush1.bf16.msra.mxu0 %v611
      %686 = vmatprep.subr.bf16.mxu0 0
      %687 = vmatpush1.bf16.msra.mxu0 %v608
      %688 = vmatprep.subr.bf16.mxu0 0
      %689 = vmatpush1.bf16.msra.mxu0 %v605
      %690 = vmatprep.subr.bf16.mxu0 0
      %691 = vmatpush1.bf16.msra.mxu0 %v602
      %692 = vmatprep.subr.bf16.mxu0 0
      %693 = vmatpush1.bf16.msra.mxu0 %v599
      %694 = vmatprep.subr.bf16.mxu0 0
      %695 = vmatpush1.bf16.msra.mxu0 %v596
      %696 = vmatprep.subr.bf16.mxu0 0
      %697 = vmatpush1.bf16.msra.mxu0 %v593
      %698 = vmatprep.subr.bf16.mxu0 0
      %699 = vmatpush2.bf16.msra.mxu0 0
      %700 = vmatprep.subr.bf16.mxu0 0
      %701 = vmatpush2.bf16.msra.mxu0 0
      %702 = vmatprep.subr.bf16.mxu0 0
      %703 = vmatpush2.bf16.msra.mxu0 0
      %704 = vmatprep.subr.bf16.mxu0 0
      %705 = vmatpush2.bf16.msra.mxu0 0
      %706 = vmatprep.subr.bf16.mxu0 0
      %707 = vmatpush2.bf16.msra.mxu0 0
      %708 = vmatprep.subr.bf16.mxu0 0
      %709 = vmatpush2.bf16.msra.mxu0 0
      %710 = vmatprep.subr.bf16.mxu0 0
      %711 = vmatpush2.bf16.msra.mxu0 0
      %712 = vmatprep.subr.bf16.mxu0 0
      %713 = vmatpush2.bf16.msra.mxu0 0
      %714 = vmatprep.mubr.bf16.mxu0 0
      %715 = vmatmul.mubr.bf16.gmra.mxu0 %v461
      %v716 = vpop.f32.mrf.mxu0
      %v717 = vadd.f32 %v507, %v716
      %v718 = vpop.f32.mrf.mxu0
      %v719 = vpop.f32.mrf.mxu0
      %v720 = vadd.f32 %v507, %v719
      %v721 = vpop.f32.mrf.mxu0
      %722 = vdwg.mxu0
      %v723 = vpack.c.bf16 %v674, %v674
      %v724 = vpack.c.bf16 %v678, %v678
      %v725 = vpack.c.bf16 %v676, %v676
      %v726 = vpack.c.bf16 %v680, %v680
      %v727 = vpack.c.bf16 %v717, %v717
      %v728 = vpack.c.bf16 %v720, %v720
      %vm729 = vcmask 523264
      %v731 = vsel %vm729, %v723, 0
      %v734 = vsel %vm729, %v725, 0
      %736 = vmatprep.subr.bf16.mxu0 0
      %737 = vmatpush1.bf16.xpose.msra.mxu0 0
      %738 = vmatprep.subr.bf16.mxu0 0
      %739 = vmatpush1.bf16.xpose.msra.mxu0 0
      %740 = vmatprep.subr.bf16.mxu0 0
      %741 = vmatpush1.bf16.xpose.msra.mxu0 0
      %742 = vmatprep.subr.bf16.mxu0 0
      %743 = vmatpush1.bf16.xpose.msra.mxu0 0
      %744 = vmatprep.subr.bf16.mxu0 0
      %745 = vmatpush1.bf16.xpose.msra.mxu0 0
      %746 = vmatprep.subr.bf16.mxu0 0
      %747 = vmatpush1.bf16.xpose.msra.mxu0 0
      %748 = vmatprep.subr.bf16.mxu0 0
      %749 = vmatpush1.bf16.xpose.msra.mxu0 0
      %750 = vmatprep.subr.bf16.mxu0 0
      %751 = vmatpush1.bf16.xpose.msra.mxu0 %v734
      %752 = vmatprep.subr.bf16.mxu0 0
      %753 = vmatpush2.bf16.xpose.msra.mxu0 0
      %754 = vmatprep.subr.bf16.mxu0 0
      %755 = vmatpush2.bf16.xpose.msra.mxu0 0
      %756 = vmatprep.subr.bf16.mxu0 0
      %757 = vmatpush2.bf16.xpose.msra.mxu0 0
      %758 = vmatprep.subr.bf16.mxu0 0
      %759 = vmatpush2.bf16.xpose.msra.mxu0 0
      %760 = vmatprep.subr.bf16.mxu0 0
      %761 = vmatpush2.bf16.xpose.msra.mxu0 0
      %762 = vmatprep.subr.bf16.mxu0 0
      %763 = vmatpush2.bf16.xpose.msra.mxu0 0
      %764 = vmatprep.subr.bf16.mxu0 0
      %765 = vmatpush2.bf16.xpose.msra.mxu0 0
      %766 = vmatprep.subr.bf16.mxu0 0
      %767 = vmatpush2.bf16.xpose.msra.mxu0 0
      %768 = vmatprep.mubr.bf16.mxu0 0
      %769 = vmatmul.mubr.bf16.gmra.mxu0 %v731
      %v770 = vpop.f32.mrf.mxu0
      %v771 = vadd.f32 0.0, %v770
      %v772 = vpop.f32.mrf.mxu0
      %v773 = vpop.f32.mrf.mxu0
      %v774 = vpop.f32.mrf.mxu0
      %775 = vdwg.mxu0
      %v777 = vsel %vm729, %v724, 0
      %v780 = vsel %vm729, %v726, 0
      %782 = vmatprep.subr.bf16.mxu0 0
      %783 = vmatpush1.bf16.xpose.msra.mxu0 0
      %784 = vmatprep.subr.bf16.mxu0 0
      %785 = vmatpush1.bf16.xpose.msra.mxu0 0
      %786 = vmatprep.subr.bf16.mxu0 0
      %787 = vmatpush1.bf16.xpose.msra.mxu0 0
      %788 = vmatprep.subr.bf16.mxu0 0
      %789 = vmatpush1.bf16.xpose.msra.mxu0 0
      %790 = vmatprep.subr.bf16.mxu0 0
      %791 = vmatpush1.bf16.xpose.msra.mxu0 0
      %792 = vmatprep.subr.bf16.mxu0 0
      %793 = vmatpush1.bf16.xpose.msra.mxu0 0
      %794 = vmatprep.subr.bf16.mxu0 0
      %795 = vmatpush1.bf16.xpose.msra.mxu0 0
      %796 = vmatprep.subr.bf16.mxu0 0
      %797 = vmatpush1.bf16.xpose.msra.mxu0 %v780
      %798 = vmatprep.subr.bf16.mxu0 0
      %799 = vmatpush2.bf16.xpose.msra.mxu0 0
      %800 = vmatprep.subr.bf16.mxu0 0
      %801 = vmatpush2.bf16.xpose.msra.mxu0 0
      %802 = vmatprep.subr.bf16.mxu0 0
      %803 = vmatpush2.bf16.xpose.msra.mxu0 0
      %804 = vmatprep.subr.bf16.mxu0 0
      %805 = vmatpush2.bf16.xpose.msra.mxu0 0
      %806 = vmatprep.subr.bf16.mxu0 0
      %807 = vmatpush2.bf16.xpose.msra.mxu0 0
      %808 = vmatprep.subr.bf16.mxu0 0
      %809 = vmatpush2.bf16.xpose.msra.mxu0 0
      %810 = vmatprep.subr.bf16.mxu0 0
      %811 = vmatpush2.bf16.xpose.msra.mxu0 0
      %812 = vmatprep.subr.bf16.mxu0 0
      %813 = vmatpush2.bf16.xpose.msra.mxu0 0
      %814 = vmatprep.mubr.bf16.mxu0 0
      %815 = vmatmul.mubr.bf16.gmra.mxu0 %v777
      %v816 = vpop.f32.mrf.mxu0
      %v817 = vadd.f32 0.0, %v816
      %v818 = vpop.f32.mrf.mxu0
      %v819 = vpop.f32.mrf.mxu0
      %v820 = vpop.f32.mrf.mxu0
      %821 = vdwg.mxu0
      %vm822 = vcmask 64512
      %v823 = vsel %vm822, %v771, -inf
      %824 = vmax.xlane.f32.xlu0 %v823
      %v825 = vpop.xlane.xlu0 %824
      %v826 = vsel %vm822, %v817, -inf
      %827 = vmax.xlane.f32.xlu0 %v826
      %v828 = vpop.xlane.xlu0 %827
      %v829 = vsub.f32 %v771, %v825
      %v830 = vsub.f32 %v817, %v828
      %v831 = vmul.f32 %v829, 1.442695
      %v832 = vpow.pop %v831
      %v833 = vmul.f32 %v830, 1.442695
      %v834 = vpow.pop %v833
      %v835 = vsel %vm822, %v832, 0.0
      %836 = vadd.xlane.f32.xlu0 %v835
      %v837 = vpop.xlane.xlu0 %836
      %v838 = vsel %vm822, %v834, 0.0
      %839 = vadd.xlane.f32.xlu0 %v838
      %v840 = vpop.xlane.xlu0 %839
      %v841 = vrcp.pop %v837
      %v842 = vrcp.pop %v840
      %v843 = vmul.f32 %v832, %v841
      %v844 = vmul.f32 %v834, %v842
      %v845 = vpack.c.bf16 %v843, %v843
      %v846 = vpack.c.bf16 %v844, %v844
      %v848 = vsel %vm822, %v845, 0
      %vm850 = vcmask 1043456
      %v852 = vsel %vm850, %v727, 0
      %854 = vmatprep.subr.bf16.mxu0 0
      %855 = vmatpush1.bf16.msra.mxu0 0
      %856 = vmatprep.subr.bf16.mxu0 0
      %857 = vmatpush1.bf16.msra.mxu0 0
      %858 = vmatprep.subr.bf16.mxu0 0
      %859 = vmatpush1.bf16.msra.mxu0 0
      %860 = vmatprep.subr.bf16.mxu0 0
      %861 = vmatpush1.bf16.msra.mxu0 0
      %862 = vmatprep.subr.bf16.mxu0 0
      %863 = vmatpush1.bf16.msra.mxu0 0
      %864 = vmatprep.subr.bf16.mxu0 0
      %865 = vmatpush1.bf16.msra.mxu0 0
      %866 = vmatprep.subr.bf16.mxu0 0
      %867 = vmatpush1.bf16.msra.mxu0 0
      %868 = vmatprep.subr.bf16.mxu0 0
      %869 = vmatpush1.bf16.msra.mxu0 %v852
      %870 = vmatprep.subr.bf16.mxu0 0
      %871 = vmatpush2.bf16.msra.mxu0 0
      %872 = vmatprep.subr.bf16.mxu0 0
      %873 = vmatpush2.bf16.msra.mxu0 0
      %874 = vmatprep.subr.bf16.mxu0 0
      %875 = vmatpush2.bf16.msra.mxu0 0
      %876 = vmatprep.subr.bf16.mxu0 0
      %877 = vmatpush2.bf16.msra.mxu0 0
      %878 = vmatprep.subr.bf16.mxu0 0
      %879 = vmatpush2.bf16.msra.mxu0 0
      %880 = vmatprep.subr.bf16.mxu0 0
      %881 = vmatpush2.bf16.msra.mxu0 0
      %882 = vmatprep.subr.bf16.mxu0 0
      %883 = vmatpush2.bf16.msra.mxu0 0
      %884 = vmatprep.subr.bf16.mxu0 0
      %885 = vmatpush2.bf16.msra.mxu0 0
      %886 = vmatprep.mubr.bf16.mxu0 0
      %887 = vmatmul.mubr.bf16.gmra.mxu0 %v848
      %v888 = vpop.f32.mrf.mxu0
      %v889 = vadd.f32 0.0, %v888
      %v890 = vpop.f32.mrf.mxu0
      %v891 = vpop.f32.mrf.mxu0
      %v892 = vpop.f32.mrf.mxu0
      %893 = vdwg.mxu0
      %v895 = vsel %vm822, %v846, 0
      %v898 = vsel %vm850, %v728, 0
      %900 = vmatprep.subr.bf16.mxu0 0
      %901 = vmatpush1.bf16.msra.mxu0 0
      %902 = vmatprep.subr.bf16.mxu0 0
      %903 = vmatpush1.bf16.msra.mxu0 0
      %904 = vmatprep.subr.bf16.mxu0 0
      %905 = vmatpush1.bf16.msra.mxu0 0
      %906 = vmatprep.subr.bf16.mxu0 0
      %907 = vmatpush1.bf16.msra.mxu0 0
      %908 = vmatprep.subr.bf16.mxu0 0
      %909 = vmatpush1.bf16.msra.mxu0 0
      %910 = vmatprep.subr.bf16.mxu0 0
      %911 = vmatpush1.bf16.msra.mxu0 0
      %912 = vmatprep.subr.bf16.mxu0 0
      %913 = vmatpush1.bf16.msra.mxu0 0
      %914 = vmatprep.subr.bf16.mxu0 0
      %915 = vmatpush1.bf16.msra.mxu0 %v898
      %916 = vmatprep.subr.bf16.mxu0 0
      %917 = vmatpush2.bf16.msra.mxu0 0
      %918 = vmatprep.subr.bf16.mxu0 0
      %919 = vmatpush2.bf16.msra.mxu0 0
      %920 = vmatprep.subr.bf16.mxu0 0
      %921 = vmatpush2.bf16.msra.mxu0 0
      %922 = vmatprep.subr.bf16.mxu0 0
      %923 = vmatpush2.bf16.msra.mxu0 0
      %924 = vmatprep.subr.bf16.mxu0 0
      %925 = vmatpush2.bf16.msra.mxu0 0
      %926 = vmatprep.subr.bf16.mxu0 0
      %927 = vmatpush2.bf16.msra.mxu0 0
      %928 = vmatprep.subr.bf16.mxu0 0
      %929 = vmatpush2.bf16.msra.mxu0 0
      %930 = vmatprep.subr.bf16.mxu0 0
      %931 = vmatpush2.bf16.msra.mxu0 0
      %932 = vmatprep.mubr.bf16.mxu0 0
      %933 = vmatmul.mubr.bf16.gmra.mxu0 %v895
      %v934 = vpop.f32.mrf.mxu0
      %v935 = vadd.f32 0.0, %v934
      %v936 = vpop.f32.mrf.mxu0
      %v937 = vpop.f32.mrf.mxu0
      %v938 = vpop.f32.mrf.mxu0
      %939 = vdwg.mxu0
      %941 = vrot.lane.b32.xlu0 %v723, 64
      %v942 = vpop.permute.xlu0 %941
      %944 = vrot.lane.b32.xlu0 %v725, 64
      %v945 = vpop.permute.xlu0 %944
      %v947 = vsel %vm729, %v942, 0
      %v950 = vsel %vm729, %v945, 0
      %952 = vmatprep.subr.bf16.mxu0 0
      %953 = vmatpush1.bf16.xpose.msra.mxu0 0
      %954 = vmatprep.subr.bf16.mxu0 0
      %955 = vmatpush1.bf16.xpose.msra.mxu0 0
      %956 = vmatprep.subr.bf16.mxu0 0
      %957 = vmatpush1.bf16.xpose.msra.mxu0 0
      %958 = vmatprep.subr.bf16.mxu0 0
      %959 = vmatpush1.bf16.xpose.msra.mxu0 0
      %960 = vmatprep.subr.bf16.mxu0 0
      %961 = vmatpush1.bf16.xpose.msra.mxu0 0
      %962 = vmatprep.subr.bf16.mxu0 0
      %963 = vmatpush1.bf16.xpose.msra.mxu0 0
      %964 = vmatprep.subr.bf16.mxu0 0
      %965 = vmatpush1.bf16.xpose.msra.mxu0 0
      %966 = vmatprep.subr.bf16.mxu0 0
      %967 = vmatpush1.bf16.xpose.msra.mxu0 %v950
      %968 = vmatprep.subr.bf16.mxu0 0
      %969 = vmatpush2.bf16.xpose.msra.mxu0 0
      %970 = vmatprep.subr.bf16.mxu0 0
      %971 = vmatpush2.bf16.xpose.msra.mxu0 0
      %972 = vmatprep.subr.bf16.mxu0 0
      %973 = vmatpush2.bf16.xpose.msra.mxu0 0
      %974 = vmatprep.subr.bf16.mxu0 0
      %975 = vmatpush2.bf16.xpose.msra.mxu0 0
      %976 = vmatprep.subr.bf16.mxu0 0
      %977 = vmatpush2.bf16.xpose.msra.mxu0 0
      %978 = vmatprep.subr.bf16.mxu0 0
      %979 = vmatpush2.bf16.xpose.msra.mxu0 0
      %980 = vmatprep.subr.bf16.mxu0 0
      %981 = vmatpush2.bf16.xpose.msra.mxu0 0
      %982 = vmatprep.subr.bf16.mxu0 0
      %983 = vmatpush2.bf16.xpose.msra.mxu0 0
      %984 = vmatprep.mubr.bf16.mxu0 0
      %985 = vmatmul.mubr.bf16.gmra.mxu0 %v947
      %v986 = vpop.f32.mrf.mxu0
      %v987 = vadd.f32 0.0, %v986
      %v988 = vpop.f32.mrf.mxu0
      %v989 = vpop.f32.mrf.mxu0
      %v990 = vpop.f32.mrf.mxu0
      %991 = vdwg.mxu0
      %993 = vrot.lane.b32.xlu0 %v724, 64
      %v994 = vpop.permute.xlu0 %993
      %996 = vrot.lane.b32.xlu0 %v726, 64
      %v997 = vpop.permute.xlu0 %996
      %v999 = vsel %vm729, %v994, 0
      %v1002 = vsel %vm729, %v997, 0
      %1004 = vmatprep.subr.bf16.mxu0 0
      %1005 = vmatpush1.bf16.xpose.msra.mxu0 0
      %1006 = vmatprep.subr.bf16.mxu0 0
      %1007 = vmatpush1.bf16.xpose.msra.mxu0 0
      %1008 = vmatprep.subr.bf16.mxu0 0
      %1009 = vmatpush1.bf16.xpose.msra.mxu0 0
      %1010 = vmatprep.subr.bf16.mxu0 0
      %1011 = vmatpush1.bf16.xpose.msra.mxu0 0
      %1012 = vmatprep.subr.bf16.mxu0 0
      %1013 = vmatpush1.bf16.xpose.msra.mxu0 0
      %1014 = vmatprep.subr.bf16.mxu0 0
      %1015 = vmatpush1.bf16.xpose.msra.mxu0 0
      %1016 = vmatprep.subr.bf16.mxu0 0
      %1017 = vmatpush1.bf16.xpose.msra.mxu0 0
      %1018 = vmatprep.subr.bf16.mxu0 0
      %1019 = vmatpush1.bf16.xpose.msra.mxu0 %v1002
      %1020 = vmatprep.subr.bf16.mxu0 0
      %1021 = vmatpush2.bf16.xpose.msra.mxu0 0
      %1022 = vmatprep.subr.bf16.mxu0 0
      %1023 = vmatpush2.bf16.xpose.msra.mxu0 0
      %1024 = vmatprep.subr.bf16.mxu0 0
      %1025 = vmatpush2.bf16.xpose.msra.mxu0 0
      %1026 = vmatprep.subr.bf16.mxu0 0
      %1027 = vmatpush2.bf16.xpose.msra.mxu0 0
      %1028 = vmatprep.subr.bf16.mxu0 0
      %1029 = vmatpush2.bf16.xpose.msra.mxu0 0
      %1030 = vmatprep.subr.bf16.mxu0 0
      %1031 = vmatpush2.bf16.xpose.msra.mxu0 0
      %1032 = vmatprep.subr.bf16.mxu0 0
      %1033 = vmatpush2.bf16.xpose.msra.mxu0 0
      %1034 = vmatprep.subr.bf16.mxu0 0
      %1035 = vmatpush2.bf16.xpose.msra.mxu0 0
      %1036 = vmatprep.mubr.bf16.mxu0 0
      %1037 = vmatmul.mubr.bf16.gmra.mxu0 %v999
      %v1038 = vpop.f32.mrf.mxu0
      %v1039 = vadd.f32 0.0, %v1038
      %v1040 = vpop.f32.mrf.mxu0
      %v1041 = vpop.f32.mrf.mxu0
      %v1042 = vpop.f32.mrf.mxu0
      %1043 = vdwg.mxu0
      %v1044 = vsel %vm822, %v987, -inf
      %1045 = vmax.xlane.f32.xlu0 %v1044
      %v1046 = vpop.xlane.xlu0 %1045
      %v1047 = vsel %vm822, %v1039, -inf
      %1048 = vmax.xlane.f32.xlu0 %v1047
      %v1049 = vpop.xlane.xlu0 %1048
      %v1050 = vsub.f32 %v987, %v1046
      %v1051 = vsub.f32 %v1039, %v1049
      %v1052 = vmul.f32 %v1050, 1.442695
      %v1053 = vpow.pop %v1052
      %v1054 = vmul.f32 %v1051, 1.442695
      %v1055 = vpow.pop %v1054
      %v1056 = vsel %vm822, %v1053, 0.0
      %1057 = vadd.xlane.f32.xlu0 %v1056
      %v1058 = vpop.xlane.xlu0 %1057
      %v1059 = vsel %vm822, %v1055, 0.0
      %1060 = vadd.xlane.f32.xlu0 %v1059
      %v1061 = vpop.xlane.xlu0 %1060
      %v1062 = vrcp.pop %v1058
      %v1063 = vrcp.pop %v1061
      %v1064 = vmul.f32 %v1053, %v1062
      %v1065 = vmul.f32 %v1055, %v1063
      %v1066 = vpack.c.bf16 %v1064, %v1064
      %v1067 = vpack.c.bf16 %v1065, %v1065
      %1069 = vrot.lane.b32.xlu0 %v727, 64
      %v1070 = vpop.permute.xlu0 %1069
      %v1072 = vsel %vm822, %v1066, 0
      %v1075 = vsel %vm850, %v1070, 0
      %1077 = vmatprep.subr.bf16.mxu0 0
      %1078 = vmatpush1.bf16.msra.mxu0 0
      %1079 = vmatprep.subr.bf16.mxu0 0
      %1080 = vmatpush1.bf16.msra.mxu0 0
      %1081 = vmatprep.subr.bf16.mxu0 0
      %1082 = vmatpush1.bf16.msra.mxu0 0
      %1083 = vmatprep.subr.bf16.mxu0 0
      %1084 = vmatpush1.bf16.msra.mxu0 0
      %1085 = vmatprep.subr.bf16.mxu0 0
      %1086 = vmatpush1.bf16.msra.mxu0 0
      %1087 = vmatprep.subr.bf16.mxu0 0
      %1088 = vmatpush1.bf16.msra.mxu0 0
      %1089 = vmatprep.subr.bf16.mxu0 0
      %1090 = vmatpush1.bf16.msra.mxu0 0
      %1091 = vmatprep.subr.bf16.mxu0 0
      %1092 = vmatpush1.bf16.msra.mxu0 %v1075
      %1093 = vmatprep.subr.bf16.mxu0 0
      %1094 = vmatpush2.bf16.msra.mxu0 0
      %1095 = vmatprep.subr.bf16.mxu0 0
      %1096 = vmatpush2.bf16.msra.mxu0 0
      %1097 = vmatprep.subr.bf16.mxu0 0
      %1098 = vmatpush2.bf16.msra.mxu0 0
      %1099 = vmatprep.subr.bf16.mxu0 0
      %1100 = vmatpush2.bf16.msra.mxu0 0
      %1101 = vmatprep.subr.bf16.mxu0 0
      %1102 = vmatpush2.bf16.msra.mxu0 0
      %1103 = vmatprep.subr.bf16.mxu0 0
      %1104 = vmatpush2.bf16.msra.mxu0 0
      %1105 = vmatprep.subr.bf16.mxu0 0
      %1106 = vmatpush2.bf16.msra.mxu0 0
      %1107 = vmatprep.subr.bf16.mxu0 0
      %1108 = vmatpush2.bf16.msra.mxu0 0
      %1109 = vmatprep.mubr.bf16.mxu0 0
      %1110 = vmatmul.mubr.bf16.gmra.mxu0 %v1072
      %v1111 = vpop.f32.mrf.mxu0
      %v1112 = vadd.f32 0.0, %v1111
      %v1113 = vpop.f32.mrf.mxu0
      %v1114 = vpop.f32.mrf.mxu0
      %v1115 = vpop.f32.mrf.mxu0
      %1116 = vdwg.mxu0
      %1118 = vrot.lane.b32.xlu0 %v728, 64
      %v1119 = vpop.permute.xlu0 %1118
      %v1121 = vsel %vm822, %v1067, 0
      %v1124 = vsel %vm850, %v1119, 0
      %1126 = vmatprep.subr.bf16.mxu0 0
      %1127 = vmatpush1.bf16.msra.mxu0 0
      %1128 = vmatprep.subr.bf16.mxu0 0
      %1129 = vmatpush1.bf16.msra.mxu0 0
      %1130 = vmatprep.subr.bf16.mxu0 0
      %1131 = vmatpush1.bf16.msra.mxu0 0
      %1132 = vmatprep.subr.bf16.mxu0 0
      %1133 = vmatpush1.bf16.msra.mxu0 0
      %1134 = vmatprep.subr.bf16.mxu0 0
      %1135 = vmatpush1.bf16.msra.mxu0 0
      %1136 = vmatprep.subr.bf16.mxu0 0
      %1137 = vmatpush1.bf16.msra.mxu0 0
      %1138 = vmatprep.subr.bf16.mxu0 0
      %1139 = vmatpush1.bf16.msra.mxu0 0
      %1140 = vmatprep.subr.bf16.mxu0 0
      %1141 = vmatpush1.bf16.msra.mxu0 %v1124
      %1142 = vmatprep.subr.bf16.mxu0 0
      %1143 = vmatpush2.bf16.msra.mxu0 0
      %1144 = vmatprep.subr.bf16.mxu0 0
      %1145 = vmatpush2.bf16.msra.mxu0 0
      %1146 = vmatprep.subr.bf16.mxu0 0
      %1147 = vmatpush2.bf16.msra.mxu0 0
      %1148 = vmatprep.subr.bf16.mxu0 0
      %1149 = vmatpush2.bf16.msra.mxu0 0
      %1150 = vmatprep.subr.bf16.mxu0 0
      %1151 = vmatpush2.bf16.msra.mxu0 0
      %1152 = vmatprep.subr.bf16.mxu0 0
      %1153 = vmatpush2.bf16.msra.mxu0 0
      %1154 = vmatprep.subr.bf16.mxu0 0
      %1155 = vmatpush2.bf16.msra.mxu0 0
      %1156 = vmatprep.subr.bf16.mxu0 0
      %1157 = vmatpush2.bf16.msra.mxu0 0
      %1158 = vmatprep.mubr.bf16.mxu0 0
      %1159 = vmatmul.mubr.bf16.gmra.mxu0 %v1121
      %v1160 = vpop.f32.mrf.mxu0
      %v1161 = vadd.f32 0.0, %v1160
      %v1162 = vpop.f32.mrf.mxu0
      %v1163 = vpop.f32.mrf.mxu0
      %v1164 = vpop.f32.mrf.mxu0
      %1165 = vdwg.mxu0
      %1168 = vrot.lane.b32.xlu0 %v1112, 64
      %v1169 = vpop.permute.xlu0 %1168
      %1170 = vrot.lane.b32.xlu0 %v1161, 64
      %v1171 = vpop.permute.xlu0 %1170
      %v1174 = vsel %vm729, %v889, %v1169
      %v1175 = vsel %vm729, %v935, %v1171
      %v1176 = vpack.c.bf16 %v1175, %v1174
      %v1177 = vld [vmem:[%s403] sm:$0xf]
      %v1178 = vld [vmem:[%s403 + $0x4] sm:$0xf]
      %v1179 = vld [vmem:[%s403 + $0x8] sm:$0xf]
      %v1180 = vld [vmem:[%s403 + $0xc] sm:$0xf]
      %v1181 = vld [vmem:[%s403 + $0x10] sm:$0xf]
      %v1182 = vld [vmem:[%s403 + $0x14] sm:$0xf]
      %v1183 = vld [vmem:[%s403 + $0x18] sm:$0xf]
      %v1184 = vld [vmem:[%s403 + $0x1c] sm:$0xf]
      %v1185 = vld [vmem:[%s403 + $0x20] sm:$0xf]
      %v1186 = vld [vmem:[%s403 + $0x24] sm:$0xf]
      %v1187 = vld [vmem:[%s403 + $0x28] sm:$0xf]
      %v1188 = vld [vmem:[%s403 + $0x2c] sm:$0xf]
      %v1189 = vld [vmem:[%s403 + $0x30] sm:$0xf]
      %v1190 = vld [vmem:[%s403 + $0x34] sm:$0xf]
      %v1191 = vld [vmem:[%s403 + $0x38] sm:$0xf]
      %v1192 = vld [vmem:[%s403 + $0x3c] sm:$0xf]
      %v1193 = vld [vmem:[%s406] sm:$0x1]
      %v1195 = vlaneseq
      %v1196 = vshrl.u32 %v1195, 7
      %v1197 = vsub.s32 0, %v1196
      %v1198 = vrot.slane %v1193, %v1197
      %v1216 = vunpack.c.l.b16 %v1177
      %v1217 = vunpack.c.l.b16 %v1178
      %v1218 = vunpack.c.l.b16 %v1179
      %v1219 = vunpack.c.l.b16 %v1180
      %v1220 = vunpack.c.l.b16 %v1181
      %v1221 = vunpack.c.l.b16 %v1182
      %v1222 = vunpack.c.l.b16 %v1183
      %v1223 = vunpack.c.l.b16 %v1184
      %v1224 = vunpack.c.l.b16 %v1185
      %v1225 = vunpack.c.l.b16 %v1186
      %v1226 = vunpack.c.l.b16 %v1187
      %v1227 = vunpack.c.l.b16 %v1188
      %v1228 = vunpack.c.l.b16 %v1189
      %v1229 = vunpack.c.l.b16 %v1190
      %v1230 = vunpack.c.l.b16 %v1191
      %v1231 = vunpack.c.l.b16 %v1192
      %v1232 = vpack.c.b16 %v1217, %v1216
      %v1233 = vpack.c.b16 %v1219, %v1218
      %v1234 = vpack.c.b16 %v1221, %v1220
      %v1235 = vpack.c.b16 %v1223, %v1222
      %v1236 = vpack.c.b16 %v1225, %v1224
      %v1237 = vpack.c.b16 %v1227, %v1226
      %v1238 = vpack.c.b16 %v1229, %v1228
      %v1239 = vpack.c.b16 %v1231, %v1230
      %1248 = vmatprep.subr.bf16.mxu0 0
      %1249 = vmatpush1.bf16.msra.mxu0 %v1239
      %1250 = vmatprep.subr.bf16.mxu0 0
      %1251 = vmatpush1.bf16.msra.mxu0 %v1238
      %1252 = vmatprep.subr.bf16.mxu0 0
      %1253 = vmatpush1.bf16.msra.mxu0 %v1237
      %1254 = vmatprep.subr.bf16.mxu0 0
      %1255 = vmatpush1.bf16.msra.mxu0 %v1236
      %1256 = vmatprep.subr.bf16.mxu0 0
      %1257 = vmatpush1.bf16.msra.mxu0 %v1235
      %1258 = vmatprep.subr.bf16.mxu0 0
      %1259 = vmatpush1.bf16.msra.mxu0 %v1234
      %1260 = vmatprep.subr.bf16.mxu0 0
      %1261 = vmatpush1.bf16.msra.mxu0 %v1233
      %1262 = vmatprep.subr.bf16.mxu0 0
      %1263 = vmatpush1.bf16.msra.mxu0 %v1232
      %1264 = vmatprep.subr.bf16.mxu0 0
      %1265 = vmatpush2.bf16.msra.mxu0 0
      %1266 = vmatprep.subr.bf16.mxu0 0
      %1267 = vmatpush2.bf16.msra.mxu0 0
      %1268 = vmatprep.subr.bf16.mxu0 0
      %1269 = vmatpush2.bf16.msra.mxu0 0
      %1270 = vmatprep.subr.bf16.mxu0 0
      %1271 = vmatpush2.bf16.msra.mxu0 0
      %1272 = vmatprep.subr.bf16.mxu0 0
      %1273 = vmatpush2.bf16.msra.mxu0 0
      %1274 = vmatprep.subr.bf16.mxu0 0
      %1275 = vmatpush2.bf16.msra.mxu0 0
      %1276 = vmatprep.subr.bf16.mxu0 0
      %1277 = vmatpush2.bf16.msra.mxu0 0
      %1278 = vmatprep.subr.bf16.mxu0 0
      %1279 = vmatpush2.bf16.msra.mxu0 0
      %1280 = vmatprep.mubr.bf16.mxu0 0
      %1281 = vmatmul.mubr.bf16.gmra.mxu0 %v1176
      %v1282 = vpop.f32.mrf.mxu0
      %v1283 = vadd.f32 %v1198, %v1282
      %v1284 = vpop.f32.mrf.mxu0
      %v1285 = vpop.f32.mrf.mxu0
      %v1286 = vadd.f32 %v1198, %v1285
      %v1287 = vpop.f32.mrf.mxu0
      %1288 = vdwg.mxu0
      %1289 = vst [vmem:[%s415] sm:$0xff] %v1283
      %1290 = vst [vmem:[%s415 + $0x8] sm:$0xff] %v1286
      %s1291 = smul.u32 2, %s23
      %p1292 = scmp.lt.s32.totalorder %s22, 2
      %s1293 = scalar_select %p1292, %s22, 2
      %p1294 = scmp.lt.s32.totalorder %s1291, 1
      %s1295 = scalar_select %p1294, %s1291, 1
      %s1296 = smul.addr %s1293, 2
      %s1297 = sadd.s32 %s1295, %s1296
      %s1298 = smul.addr %s1297, 8
      %s1299 = scalar_lea.vmem %s7, %s1298
      // Predicated region
      $region49: #{gated_sf_attention_block.2} parent=47 // pred_check
        %p1300 = pneg %p234
      $region50: #{gated_sf_attention_block.2} parent=47 // pred_check_branch
        %1302 = sbr.rel (%p1300) target = $region52
      $region51: #{gated_sf_attention_block.2} parent=47 // pred_region
        %s1303 = smul.u32 2, %s23
      $region52: #{gated_sf_attention_block.2} parent=47 // pred_fallthru
        _
    $region48: #{gated_sf_attention_block.2} parent=5 // pred_fallthru
      _
    %p1304 = scmp.le.s32.totalorder 2, %s13
    // Predicated region
    $region53: #{gated_sf_attention_block.2} parent=5 // pred_check
      %p1305 = pneg %p1304
    $region54: #{gated_sf_attention_block.2} parent=5 // pred_check_branch
      %1307 = sbr.rel (%p1305) target = $region56
    $region55: #{gated_sf_attention_block.2} parent=5 // pred_region
      %s1308 = ssub.s32 %s13, 2
      // Predicated region
      $region57: #{gated_sf_attention_block.2} parent=55 // pred_check
        %p1309 = pneg %p240
      $region58: #{gated_sf_attention_block.2} parent=55 // pred_check_branch
        %1311 = sbr.rel (%p1309) target = $region60
      $region59: #{gated_sf_attention_block.2} parent=55 // pred_region
        %s1312 = smul.u32 2, %s25
        %p1313 = scmp.lt.s32.totalorder %s24, 2
        %s1314 = scalar_select %p1313, %s24, 2
        %p1315 = scmp.lt.s32.totalorder %s1312, 1
        %s1316 = scalar_select %p1315, %s1312, 1
        %s1317 = smul.addr %s1314, 2
        %s1318 = sadd.s32 %s1316, %s1317
        %s1319 = smul.addr %s1318, 8
        %s1320 = scalar_lea.vmem %s7, %s1319
      $region60: #{gated_sf_attention_block.2} parent=55 // pred_fallthru
        _
    $region56: #{gated_sf_attention_block.2} parent=5 // pred_fallthru
      _
  $region6: #{gated_sf_attention_block.2} parent=0 // loop_footer
    %s17 = sadd.s32 1, %s13
  $region7: #{gated_sf_attention_block.2} parent=0 // loop_footer_branch
    %12 = sbr.rel target = $region3
  $region8: #{gated_sf_attention_block.2} parent=0 // loop_exit
    _

// kernel: gated_sf_attention_block.3
$region0: #{gated_sf_attention_block.3}
  #allocation0 [shape = 'u32[]', space=smem, size = 0x4, offset = 0x4, fixed_abs, tag = 'smem constant byte address 0x4 - core index']
  #allocation1 [shape = 'u32[144,128]{1,0:T(1,128)}', space=vmem, size = 0x12000, scoped, tag = 'internal scratch']
  %s0 = inlined_call_operand.vmem [shape: f32[2,8,128], index: 0, kind: input, shape index: {}]
  %s1 = inlined_call_operand.vmem [shape: f32[1,128], index: 1, kind: input, shape index: {}]
  %s2 = inlined_call_operand.vmem [shape: f32[1,128], index: 2, kind: input, shape index: {}]
  %s3 = inlined_call_operand.vmem [shape: bf16[128,512], index: 3, kind: input, shape index: {}]
  %s4 = inlined_call_operand.vmem [shape: f32[1,512], index: 4, kind: input, shape index: {}]
  %s5 = inlined_call_operand.vmem [shape: bf16[512,128], index: 5, kind: input, shape index: {}]
  %s6 = inlined_call_operand.vmem [shape: f32[1,128], index: 6, kind: input, shape index: {}]
  %s7 = inlined_call_operand.vmem [shape: f32[2,8,128], index: 7, kind: output, shape index: {}]
  %s8 = sld [smem:[#allocation0]]
  $region38: #{gated_sf_attention_block.3} parent=0
    _
  %s10 = ssub.s32 1, %s8
  %s11 = scalar_select 0, %s10, %s8
  // Predicated region
  $region2: #{gated_sf_attention_block.3} parent=0 // pred_check
    _
  $region3: #{gated_sf_attention_block.3} parent=0 // pred_check_branch
    %13 = sbr.rel (0) target = $region5
  $region4: #{gated_sf_attention_block.3} parent=0 // pred_region
    _
  $region5: #{gated_sf_attention_block.3} parent=0 // pred_fallthru
    _
  // Predicated region
  $region6: #{gated_sf_attention_block.3} parent=0 // pred_check
    _
  $region7: #{gated_sf_attention_block.3} parent=0 // pred_check_branch
    %15 = sbr.rel (0) target = $region9
  $region8: #{gated_sf_attention_block.3} parent=0 // pred_region
    _
  $region9: #{gated_sf_attention_block.3} parent=0 // pred_fallthru
    _
  // Predicated region
  $region10: #{gated_sf_attention_block.3} parent=0 // pred_check
    _
  $region11: #{gated_sf_attention_block.3} parent=0 // pred_check_branch
    %17 = sbr.rel (0) target = $region13
  $region12: #{gated_sf_attention_block.3} parent=0 // pred_region
    _
  $region13: #{gated_sf_attention_block.3} parent=0 // pred_fallthru
    _
  // Predicated region
  $region14: #{gated_sf_attention_block.3} parent=0 // pred_check
    _
  $region15: #{gated_sf_attention_block.3} parent=0 // pred_check_branch
    %19 = sbr.rel (0) target = $region17
  $region16: #{gated_sf_attention_block.3} parent=0 // pred_region
    _
  $region17: #{gated_sf_attention_block.3} parent=0 // pred_fallthru
    _
  // Predicated region
  $region18: #{gated_sf_attention_block.3} parent=0 // pred_check
    _
  $region19: #{gated_sf_attention_block.3} parent=0 // pred_check_branch
    %21 = sbr.rel (0) target = $region21
  $region20: #{gated_sf_attention_block.3} parent=0 // pred_region
    _
  $region21: #{gated_sf_attention_block.3} parent=0 // pred_fallthru
    _
  // Predicated region
  $region22: #{gated_sf_attention_block.3} parent=0 // pred_check
    _
  $region23: #{gated_sf_attention_block.3} parent=0 // pred_check_branch
    %23 = sbr.rel (0) target = $region25
  $region24: #{gated_sf_attention_block.3} parent=0 // pred_region
    _
  $region25: #{gated_sf_attention_block.3} parent=0 // pred_fallthru
    _
  // Predicated region
  $region26: #{gated_sf_attention_block.3} parent=0 // pred_check
    _
  $region27: #{gated_sf_attention_block.3} parent=0 // pred_check_branch
    %25 = sbr.rel (0) target = $region29
  $region28: #{gated_sf_attention_block.3} parent=0 // pred_region
    _
  $region29: #{gated_sf_attention_block.3} parent=0 // pred_fallthru
    _
  %v27 = vld [vmem:[%s0] sm:$0xff]
  %v28 = vld [vmem:[%s0 + $0x8] sm:$0xff]
  %v29 = vld [vmem:[%s1] sm:$0x1]
  %v30 = vld [vmem:[%s2] sm:$0x1]
  %31 = vadd.xlane.f32.xlu0 %v27
  %v32 = vpop.xlane.xlu0 %31
  %33 = vadd.xlane.f32.xlu0 %v28
  %v34 = vpop.xlane.xlu0 %33
  %v35 = vrcp.pop 128.0
  %v36 = vmul.f32 %v32, %v35
  %v37 = vmul.f32 %v34, %v35
  %v38 = vsub.f32 %v27, %v36
  %v39 = vsub.f32 %v28, %v37
  %v40 = vmul.f32 %v38, %v38
  %v41 = vmul.f32 %v39, %v39
  %42 = vadd.xlane.f32.xlu0 %v40
  %v43 = vpop.xlane.xlu0 %42
  %44 = vadd.xlane.f32.xlu0 %v41
  %v45 = vpop.xlane.xlu0 %44
  %v46 = vmul.f32 %v43, %v35
  %v47 = vmul.f32 %v45, %v35
  %v48 = vadd.f32 %v46, 1e-05
  %v49 = vadd.f32 %v47, 1e-05
  %v50 = vrsqrt.pop %v48
  %v51 = vrsqrt.pop %v49
  %v52 = vmul.f32 %v38, %v50
  %v53 = vmul.f32 %v39, %v51
  %v55 = vlaneseq
  %v56 = vshrl.u32 %v55, 7
  %v57 = vsub.s32 0, %v56
  %v58 = vrot.slane %v29, %v57
  %v60 = vmul.f32 %v52, %v58
  %v61 = vmul.f32 %v53, %v58
  %v63 = vlaneseq
  %v64 = vshrl.u32 %v63, 7
  %v65 = vsub.s32 0, %v64
  %v66 = vrot.slane %v30, %v65
  %v68 = vadd.f32 %v60, %v66
  %v69 = vadd.f32 %v61, %v66
  %v70 = vpack.c.bf16 %v69, %v68
  %v71 = vld [vmem:[%s3] sm:$0xff]
  %v72 = vld [vmem:[%s3 + $0x8] sm:$0xff]
  %v73 = vld [vmem:[%s3 + $0x10] sm:$0xff]
  %v74 = vld [vmem:[%s3 + $0x18] sm:$0xff]
  %v75 = vld [vmem:[%s3 + $0x20] sm:$0xff]
  %v76 = vld [vmem:[%s3 + $0x28] sm:$0xff]
  %v77 = vld [vmem:[%s3 + $0x30] sm:$0xff]
  %v78 = vld [vmem:[%s3 + $0x38] sm:$0xff]
  %v79 = vld [vmem:[%s3 + $0x40] sm:$0xff]
  %v80 = vld [vmem:[%s3 + $0x48] sm:$0xff]
  %v81 = vld [vmem:[%s3 + $0x50] sm:$0xff]
  %v82 = vld [vmem:[%s3 + $0x58] sm:$0xff]
  %v83 = vld [vmem:[%s3 + $0x60] sm:$0xff]
  %v84 = vld [vmem:[%s3 + $0x68] sm:$0xff]
  %v85 = vld [vmem:[%s3 + $0x70] sm:$0xff]
  %v86 = vld [vmem:[%s3 + $0x78] sm:$0xff]
  %v87 = vld [vmem:[%s3 + $0x80] sm:$0xff]
  %v88 = vld [vmem:[%s3 + $0x88] sm:$0xff]
  %v89 = vld [vmem:[%s3 + $0x90] sm:$0xff]
  %v90 = vld [vmem:[%s3 + $0x98] sm:$0xff]
  %v91 = vld [vmem:[%s3 + $0xa0] sm:$0xff]
  %v92 = vld [vmem:[%s3 + $0xa8] sm:$0xff]
  %v93 = vld [vmem:[%s3 + $0xb0] sm:$0xff]
  %v94 = vld [vmem:[%s3 + $0xb8] sm:$0xff]
  %v95 = vld [vmem:[%s3 + $0xc0] sm:$0xff]
  %v96 = vld [vmem:[%s3 + $0xc8] sm:$0xff]
  %v97 = vld [vmem:[%s3 + $0xd0] sm:$0xff]
  %v98 = vld [vmem:[%s3 + $0xd8] sm:$0xff]
  %v99 = vld [vmem:[%s3 + $0xe0] sm:$0xff]
  %v100 = vld [vmem:[%s3 + $0xe8] sm:$0xff]
  %v101 = vld [vmem:[%s3 + $0xf0] sm:$0xff]
  %v102 = vld [vmem:[%s3 + $0xf8] sm:$0xff]
  %v103 = vld [vmem:[%s4] sm:$0xf]
  %v105 = vlaneseq
  %v106 = vshrl.u32 %v105, 7
  %v107 = vsub.s32 0, %v106
  %v108 = vrot.slane %v103, %v107
  %v109 = vlaneseq
  %v110 = vshrl.u32 %v109, 7
  %v111 = vsub.s32 1, %v110
  %v112 = vrot.slane %v103, %v111
  %v113 = vlaneseq
  %v114 = vshrl.u32 %v113, 7
  %v115 = vsub.s32 2, %v114
  %v116 = vrot.slane %v103, %v115
  %v117 = vlaneseq
  %v118 = vshrl.u32 %v117, 7
  %v119 = vsub.s32 3, %v118
  %v120 = vrot.slane %v103, %v119
  %v157 = vunpack.c.l.b16 %v71
  %v158 = vunpack.c.h.b16 %v71
  %v159 = vunpack.c.l.b16 %v72
  %v160 = vunpack.c.h.b16 %v72
  %v161 = vunpack.c.l.b16 %v73
  %v162 = vunpack.c.h.b16 %v73
  %v163 = vunpack.c.l.b16 %v74
  %v164 = vunpack.c.h.b16 %v74
  %v165 = vunpack.c.l.b16 %v75
  %v166 = vunpack.c.h.b16 %v75
  %v167 = vunpack.c.l.b16 %v76
  %v168 = vunpack.c.h.b16 %v76
  %v169 = vunpack.c.l.b16 %v77
  %v170 = vunpack.c.h.b16 %v77
  %v171 = vunpack.c.l.b16 %v78
  %v172 = vunpack.c.h.b16 %v78
  %v173 = vunpack.c.l.b16 %v79
  %v174 = vunpack.c.h.b16 %v79
  %v175 = vunpack.c.l.b16 %v80
  %v176 = vunpack.c.h.b16 %v80
  %v177 = vunpack.c.l.b16 %v81
  %v178 = vunpack.c.h.b16 %v81
  %v179 = vunpack.c.l.b16 %v82
  %v180 = vunpack.c.h.b16 %v82
  %v181 = vunpack.c.l.b16 %v83
  %v182 = vunpack.c.h.b16 %v83
  %v183 = vunpack.c.l.b16 %v84
  %v184 = vunpack.c.h.b16 %v84
  %v185 = vunpack.c.l.b16 %v85
  %v186 = vunpack.c.h.b16 %v85
  %v187 = vunpack.c.l.b16 %v86
  %v188 = vunpack.c.h.b16 %v86
  %v189 = vunpack.c.l.b16 %v87
  %v190 = vunpack.c.h.b16 %v87
  %v191 = vunpack.c.l.b16 %v88
  %v192 = vunpack.c.h.b16 %v88
  %v193 = vunpack.c.l.b16 %v89
  %v194 = vunpack.c.h.b16 %v89
  %v195 = vunpack.c.l.b16 %v90
  %v196 = vunpack.c.h.b16 %v90
  %v197 = vunpack.c.l.b16 %v91
  %v198 = vunpack.c.h.b16 %v91
  %v199 = vunpack.c.l.b16 %v92
  %v200 = vunpack.c.h.b16 %v92
  %v201 = vunpack.c.l.b16 %v93
  %v202 = vunpack.c.h.b16 %v93
  %v203 = vunpack.c.l.b16 %v94
  %v204 = vunpack.c.h.b16 %v94
  %v205 = vunpack.c.l.b16 %v95
  %v206 = vunpack.c.h.b16 %v95
  %v207 = vunpack.c.l.b16 %v96
  %v208 = vunpack.c.h.b16 %v96
  %v209 = vunpack.c.l.b16 %v97
  %v210 = vunpack.c.h.b16 %v97
  %v211 = vunpack.c.l.b16 %v98
  %v212 = vunpack.c.h.b16 %v98
  %v213 = vunpack.c.l.b16 %v99
  %v214 = vunpack.c.h.b16 %v99
  %v215 = vunpack.c.l.b16 %v100
  %v216 = vunpack.c.h.b16 %v100
  %v217 = vunpack.c.l.b16 %v101
  %v218 = vunpack.c.h.b16 %v101
  %v219 = vunpack.c.l.b16 %v102
  %v220 = vunpack.c.h.b16 %v102
  %v221 = vpack.c.b16 %v161, %v157
  %v222 = vpack.c.b16 %v162, %v158
  %v223 = vpack.c.b16 %v163, %v159
  %v224 = vpack.c.b16 %v164, %v160
  %v225 = vpack.c.b16 %v169, %v165
  %v226 = vpack.c.b16 %v170, %v166
  %v227 = vpack.c.b16 %v171, %v167
  %v228 = vpack.c.b16 %v172, %v168
  %v229 = vpack.c.b16 %v177, %v173
  %v230 = vpack.c.b16 %v178, %v174
  %v231 = vpack.c.b16 %v179, %v175
  %v232 = vpack.c.b16 %v180, %v176
  %v233 = vpack.c.b16 %v185, %v181
  %v234 = vpack.c.b16 %v186, %v182
  %v235 = vpack.c.b16 %v187, %v183
  %v236 = vpack.c.b16 %v188, %v184
  %v237 = vpack.c.b16 %v193, %v189
  %v238 = vpack.c.b16 %v194, %v190
  %v239 = vpack.c.b16 %v195, %v191
  %v240 = vpack.c.b16 %v196, %v192
  %v241 = vpack.c.b16 %v201, %v197
  %v242 = vpack.c.b16 %v202, %v198
  %v243 = vpack.c.b16 %v203, %v199
  %v244 = vpack.c.b16 %v204, %v200
  %v245 = vpack.c.b16 %v209, %v205
  %v246 = vpack.c.b16 %v210, %v206
  %v247 = vpack.c.b16 %v211, %v207
  %v248 = vpack.c.b16 %v212, %v208
  %v249 = vpack.c.b16 %v217, %v213
  %v250 = vpack.c.b16 %v218, %v214
  %v251 = vpack.c.b16 %v219, %v215
  %v252 = vpack.c.b16 %v220, %v216
  %285 = vmatprep.subr.bf16.mxu0 %v250
  %286 = vmatpush1.bf16.msra.mxu0 %v249
  %287 = vmatprep.subr.bf16.mxu0 %v246
  %288 = vmatpush1.bf16.msra.mxu0 %v245
  %289 = vmatprep.subr.bf16.mxu0 %v242
  %290 = vmatpush1.bf16.msra.mxu0 %v241
  %291 = vmatprep.subr.bf16.mxu0 %v238
  %292 = vmatpush1.bf16.msra.mxu0 %v237
  %293 = vmatprep.subr.bf16.mxu0 %v234
  %294 = vmatpush1.bf16.msra.mxu0 %v233
  %295 = vmatprep.subr.bf16.mxu0 %v230
  %296 = vmatpush1.bf16.msra.mxu0 %v229
  %297 = vmatprep.subr.bf16.mxu0 %v226
  %298 = vmatpush1.bf16.msra.mxu0 %v225
  %299 = vmatprep.subr.bf16.mxu0 %v222
  %300 = vmatpush1.bf16.msra.mxu0 %v221
  %301 = vmatprep.subr.bf16.mxu0 0
  %302 = vmatpush2.bf16.msra.mxu0 0
  %303 = vmatprep.subr.bf16.mxu0 0
  %304 = vmatpush2.bf16.msra.mxu0 0
  %305 = vmatprep.subr.bf16.mxu0 0
  %306 = vmatpush2.bf16.msra.mxu0 0
  %307 = vmatprep.subr.bf16.mxu0 0
  %308 = vmatpush2.bf16.msra.mxu0 0
  %309 = vmatprep.subr.bf16.mxu0 0
  %310 = vmatpush2.bf16.msra.mxu0 0
  %311 = vmatprep.subr.bf16.mxu0 0
  %312 = vmatpush2.bf16.msra.mxu0 0
  %313 = vmatprep.subr.bf16.mxu0 0
  %314 = vmatpush2.bf16.msra.mxu0 0
  %315 = vmatprep.subr.bf16.mxu0 0
  %316 = vmatpush2.bf16.msra.mxu0 0
  %317 = vmatprep.mubr.bf16.mxu0 0
  %318 = vmatmul.mubr.bf16.gmra.mxu0 %v70
  %v319 = vpop.f32.mrf.mxu0
  %v320 = vadd.f32 %v108, %v319
  %v321 = vpop.f32.mrf.mxu0
  %v322 = vadd.f32 %v112, %v321
  %v323 = vpop.f32.mrf.mxu0
  %v324 = vadd.f32 %v108, %v323
  %v325 = vpop.f32.mrf.mxu0
  %v326 = vadd.f32 %v112, %v325
  %327 = vdwg.mxu0
  %328 = vmatprep.subr.bf16.mxu0 %v252
  %329 = vmatpush1.bf16.msra.mxu0 %v251
  %330 = vmatprep.subr.bf16.mxu0 %v248
  %331 = vmatpush1.bf16.msra.mxu0 %v247
  %332 = vmatprep.subr.bf16.mxu0 %v244
  %333 = vmatpush1.bf16.msra.mxu0 %v243
  %334 = vmatprep.subr.bf16.mxu0 %v240
  %335 = vmatpush1.bf16.msra.mxu0 %v239
  %336 = vmatprep.subr.bf16.mxu0 %v236
  %337 = vmatpush1.bf16.msra.mxu0 %v235
  %338 = vmatprep.subr.bf16.mxu0 %v232
  %339 = vmatpush1.bf16.msra.mxu0 %v231
  %340 = vmatprep.subr.bf16.mxu0 %v228
  %341 = vmatpush1.bf16.msra.mxu0 %v227
  %342 = vmatprep.subr.bf16.mxu0 %v224
  %343 = vmatpush1.bf16.msra.mxu0 %v223
  %344 = vmatprep.subr.bf16.mxu0 0
  %345 = vmatpush2.bf16.msra.mxu0 0
  %346 = vmatprep.subr.bf16.mxu0 0
  %347 = vmatpush2.bf16.msra.mxu0 0
  %348 = vmatprep.subr.bf16.mxu0 0
  %349 = vmatpush2.bf16.msra.mxu0 0
  %350 = vmatprep.subr.bf16.mxu0 0
  %351 = vmatpush2.bf16.msra.mxu0 0
  %352 = vmatprep.subr.bf16.mxu0 0
  %353 = vmatpush2.bf16.msra.mxu0 0
  %354 = vmatprep.subr.bf16.mxu0 0
  %355 = vmatpush2.bf16.msra.mxu0 0
  %356 = vmatprep.subr.bf16.mxu0 0
  %357 = vmatpush2.bf16.msra.mxu0 0
  %358 = vmatprep.subr.bf16.mxu0 0
  %359 = vmatpush2.bf16.msra.mxu0 0
  %360 = vmatprep.mubr.bf16.mxu0 0
  %361 = vmatmul.mubr.bf16.gmra.mxu0 %v70
  %v362 = vpop.f32.mrf.mxu0
  %v363 = vadd.f32 %v116, %v362
  %v364 = vpop.f32.mrf.mxu0
  %v365 = vadd.f32 %v120, %v364
  %v366 = vpop.f32.mrf.mxu0
  %v367 = vadd.f32 %v116, %v366
  %v368 = vpop.f32.mrf.mxu0
  %v369 = vadd.f32 %v120, %v368
  %370 = vdwg.mxu0
  %v371 = vmul.f32 %v320, 1.702
  %v372 = vmul.f32 %v322, 1.702
  %v373 = vmul.f32 %v363, 1.702
  %v374 = vmul.f32 %v365, 1.702
  %v375 = vmul.f32 %v324, 1.702
  %v376 = vmul.f32 %v326, 1.702
  %v377 = vmul.f32 %v367, 1.702
  %v378 = vmul.f32 %v369, 1.702
  %v379 = vxor.u32 %v371, 2147483648
  %v380 = vxor.u32 %v372, 2147483648
  %v381 = vxor.u32 %v373, 2147483648
  %v382 = vxor.u32 %v374, 2147483648
  %v383 = vxor.u32 %v375, 2147483648
  %v384 = vxor.u32 %v376, 2147483648
  %v385 = vxor.u32 %v377, 2147483648
  %v386 = vxor.u32 %v378, 2147483648
  %v387 = vmul.f32 %v379, 1.442695
  %v388 = vpow.pop %v387
  %v389 = vmul.f32 %v380, 1.442695
  %v390 = vpow.pop %v389
  %v391 = vmul.f32 %v381, 1.442695
  %v392 = vpow.pop %v391
  %v393 = vmul.f32 %v382, 1.442695
  %v394 = vpow.pop %v393
  %v395 = vmul.f32 %v383, 1.442695
  %v396 = vpow.pop %v395
  %v397 = vmul.f32 %v384, 1.442695
  %v398 = vpow.pop %v397
  %v399 = vmul.f32 %v385, 1.442695
  %v400 = vpow.pop %v399
  %v401 = vmul.f32 %v386, 1.442695
  %v402 = vpow.pop %v401
  %v403 = vadd.f32 %v388, 1.0
  %v404 = vadd.f32 %v390, 1.0
  %v405 = vadd.f32 %v392, 1.0
  %v406 = vadd.f32 %v394, 1.0
  %v407 = vadd.f32 %v396, 1.0
  %v408 = vadd.f32 %v398, 1.0
  %v409 = vadd.f32 %v400, 1.0
  %v410 = vadd.f32 %v402, 1.0
  %v411 = vrcp.pop %v403
  %v412 = vmul.f32 1.0, %v411
  %v413 = vrcp.pop %v404
  %v414 = vmul.f32 1.0, %v413
  %v415 = vrcp.pop %v405
  %v416 = vmul.f32 1.0, %v415
  %v417 = vrcp.pop %v406
  %v418 = vmul.f32 1.0, %v417
  %v419 = vrcp.pop %v407
  %v420 = vmul.f32 1.0, %v419
  %v421 = vrcp.pop %v408
  %v422 = vmul.f32 1.0, %v421
  %v423 = vrcp.pop %v409
  %v424 = vmul.f32 1.0, %v423
  %v425 = vrcp.pop %v410
  %v426 = vmul.f32 1.0, %v425
  %v427 = vmul.f32 %v320, %v412
  %v428 = vmul.f32 %v322, %v414
  %v429 = vmul.f32 %v363, %v416
  %v430 = vmul.f32 %v365, %v418
  %v431 = vmul.f32 %v324, %v420
  %v432 = vmul.f32 %v326, %v422
  %v433 = vmul.f32 %v367, %v424
  %v434 = vmul.f32 %v369, %v426
  %v435 = vpack.c.bf16 %v431, %v427
  %v436 = vpack.c.bf16 %v432, %v428
  %v437 = vpack.c.bf16 %v433, %v429
  %v438 = vpack.c.bf16 %v434, %v430
  %v439 = vld [vmem:[%s5] sm:$0xf]
  %v440 = vld [vmem:[%s5 + $0x4] sm:$0xf]
  %v441 = vld [vmem:[%s5 + $0x8] sm:$0xf]
  %v442 = vld [vmem:[%s5 + $0xc] sm:$0xf]
  %v443 = vld [vmem:[%s5 + $0x10] sm:$0xf]
  %v444 = vld [vmem:[%s5 + $0x14] sm:$0xf]
  %v445 = vld [vmem:[%s5 + $0x18] sm:$0xf]
  %v446 = vld [vmem:[%s5 + $0x1c] sm:$0xf]
  %v447 = vld [vmem:[%s5 + $0x20] sm:$0xf]
  %v448 = vld [vmem:[%s5 + $0x24] sm:$0xf]
  %v449 = vld [vmem:[%s5 + $0x28] sm:$0xf]
  %v450 = vld [vmem:[%s5 + $0x2c] sm:$0xf]
  %v451 = vld [vmem:[%s5 + $0x30] sm:$0xf]
  %v452 = vld [vmem:[%s5 + $0x34] sm:$0xf]
  %v453 = vld [vmem:[%s5 + $0x38] sm:$0xf]
  %v454 = vld [vmem:[%s5 + $0x3c] sm:$0xf]
  %v455 = vld [vmem:[%s5 + $0x40] sm:$0xf]
  %v456 = vld [vmem:[%s5 + $0x44] sm:$0xf]
  %v457 = vld [vmem:[%s5 + $0x48] sm:$0xf]
  %v458 = vld [vmem:[%s5 + $0x4c] sm:$0xf]
  %v459 = vld [vmem:[%s5 + $0x50] sm:$0xf]
  %v460 = vld [vmem:[%s5 + $0x54] sm:$0xf]
  %v461 = vld [vmem:[%s5 + $0x58] sm:$0xf]
  %v462 = vld [vmem:[%s5 + $0x5c] sm:$0xf]
  %v463 = vld [vmem:[%s5 + $0x60] sm:$0xf]
  %v464 = vld [vmem:[%s5 + $0x64] sm:$0xf]
  %v465 = vld [vmem:[%s5 + $0x68] sm:$0xf]
  %v466 = vld [vmem:[%s5 + $0x6c] sm:$0xf]
  %v467 = vld [vmem:[%s5 + $0x70] sm:$0xf]
  %v468 = vld [vmem:[%s5 + $0x74] sm:$0xf]
  %v469 = vld [vmem:[%s5 + $0x78] sm:$0xf]
  %v470 = vld [vmem:[%s5 + $0x7c] sm:$0xf]
  %v471 = vld [vmem:[%s5 + $0x80] sm:$0xf]
  %v472 = vld [vmem:[%s5 + $0x84] sm:$0xf]
  %v473 = vld [vmem:[%s5 + $0x88] sm:$0xf]
  %v474 = vld [vmem:[%s5 + $0x8c] sm:$0xf]
  %v475 = vld [vmem:[%s5 + $0x90] sm:$0xf]
  %v476 = vld [vmem:[%s5 + $0x94] sm:$0xf]
  %v477 = vld [vmem:[%s5 + $0x98] sm:$0xf]
  %v478 = vld [vmem:[%s5 + $0x9c] sm:$0xf]
  %v479 = vld [vmem:[%s5 + $0xa0] sm:$0xf]
  %v480 = vld [vmem:[%s5 + $0xa4] sm:$0xf]
  %v481 = vld [vmem:[%s5 + $0xa8] sm:$0xf]
  %v482 = vld [vmem:[%s5 + $0xac] sm:$0xf]
  %v483 = vld [vmem:[%s5 + $0xb0] sm:$0xf]
  %v484 = vld [vmem:[%s5 + $0xb4] sm:$0xf]
  %v485 = vld [vmem:[%s5 + $0xb8] sm:$0xf]
  %v486 = vld [vmem:[%s5 + $0xbc] sm:$0xf]
  %v487 = vld [vmem:[%s5 + $0xc0] sm:$0xf]
  %v488 = vld [vmem:[%s5 + $0xc4] sm:$0xf]
  %v489 = vld [vmem:[%s5 + $0xc8] sm:$0xf]
  %v490 = vld [vmem:[%s5 + $0xcc] sm:$0xf]
  %v491 = vld [vmem:[%s5 + $0xd0] sm:$0xf]
  %v492 = vld [vmem:[%s5 + $0xd4] sm:$0xf]
  %v493 = vld [vmem:[%s5 + $0xd8] sm:$0xf]
  %v494 = vld [vmem:[%s5 + $0xdc] sm:$0xf]
  %v495 = vld [vmem:[%s5 + $0xe0] sm:$0xf]
  %v496 = vld [vmem:[%s5 + $0xe4] sm:$0xf]
  %v497 = vld [vmem:[%s5 + $0xe8] sm:$0xf]
  %v498 = vld [vmem:[%s5 + $0xec] sm:$0xf]
  %v499 = vld [vmem:[%s5 + $0xf0] sm:$0xf]
  %v500 = vld [vmem:[%s5 + $0xf4] sm:$0xf]
  %v501 = vld [vmem:[%s5 + $0xf8] sm:$0xf]
  %v502 = vld [vmem:[%s5 + $0xfc] sm:$0xf]
  %v503 = vld [vmem:[%s6] sm:$0x1]
  %v505 = vlaneseq
  %v506 = vshrl.u32 %v505, 7
  %v507 = vsub.s32 0, %v506
  %v508 = vrot.slane %v503, %v507
  %v574 = vunpack.c.l.b16 %v439
  %v575 = vunpack.c.l.b16 %v440
  %v576 = vunpack.c.l.b16 %v441
  %v577 = vunpack.c.l.b16 %v442
  %v578 = vunpack.c.l.b16 %v443
  %v579 = vunpack.c.l.b16 %v444
  %v580 = vunpack.c.l.b16 %v445
  %v581 = vunpack.c.l.b16 %v446
  %v582 = vunpack.c.l.b16 %v447
  %v583 = vunpack.c.l.b16 %v448
  %v584 = vunpack.c.l.b16 %v449
  %v585 = vunpack.c.l.b16 %v450
  %v586 = vunpack.c.l.b16 %v451
  %v587 = vunpack.c.l.b16 %v452
  %v588 = vunpack.c.l.b16 %v453
  %v589 = vunpack.c.l.b16 %v454
  %v590 = vunpack.c.l.b16 %v455
  %v591 = vunpack.c.l.b16 %v456
  %v592 = vunpack.c.l.b16 %v457
  %v593 = vunpack.c.l.b16 %v458
  %v594 = vunpack.c.l.b16 %v459
  %v595 = vunpack.c.l.b16 %v460
  %v596 = vunpack.c.l.b16 %v461
  %v597 = vunpack.c.l.b16 %v462
  %v598 = vunpack.c.l.b16 %v463
  %v599 = vunpack.c.l.b16 %v464
  %v600 = vunpack.c.l.b16 %v465
  %v601 = vunpack.c.l.b16 %v466
  %v602 = vunpack.c.l.b16 %v467
  %v603 = vunpack.c.l.b16 %v468
  %v604 = vunpack.c.l.b16 %v469
  %v605 = vunpack.c.l.b16 %v470
  %v606 = vunpack.c.l.b16 %v471
  %v607 = vunpack.c.l.b16 %v472
  %v608 = vunpack.c.l.b16 %v473
  %v609 = vunpack.c.l.b16 %v474
  %v610 = vunpack.c.l.b16 %v475
  %v611 = vunpack.c.l.b16 %v476
  %v612 = vunpack.c.l.b16 %v477
  %v613 = vunpack.c.l.b16 %v478
  %v614 = vunpack.c.l.b16 %v479
  %v615 = vunpack.c.l.b16 %v480
  %v616 = vunpack.c.l.b16 %v481
  %v617 = vunpack.c.l.b16 %v482
  %v618 = vunpack.c.l.b16 %v483
  %v619 = vunpack.c.l.b16 %v484
  %v620 = vunpack.c.l.b16 %v485
  %v621 = vunpack.c.l.b16 %v486
  %v622 = vunpack.c.l.b16 %v487
  %v623 = vunpack.c.l.b16 %v488
  %v624 = vunpack.c.l.b16 %v489
  %v625 = vunpack.c.l.b16 %v490
  %v626 = vunpack.c.l.b16 %v491
  %v627 = vunpack.c.l.b16 %v492
  %v628 = vunpack.c.l.b16 %v493
  %v629 = vunpack.c.l.b16 %v494
  %v630 = vunpack.c.l.b16 %v495
  %v631 = vunpack.c.l.b16 %v496
  %v632 = vunpack.c.l.b16 %v497
  %v633 = vunpack.c.l.b16 %v498
  %v634 = vunpack.c.l.b16 %v499
  %v635 = vunpack.c.l.b16 %v500
  %v636 = vunpack.c.l.b16 %v501
  %v637 = vunpack.c.l.b16 %v502
  %v638 = vpack.c.b16 %v575, %v574
  %v639 = vpack.c.b16 %v577, %v576
  %v640 = vpack.c.b16 %v579, %v578
  %v641 = vpack.c.b16 %v581, %v580
  %v642 = vpack.c.b16 %v583, %v582
  %v643 = vpack.c.b16 %v585, %v584
  %v644 = vpack.c.b16 %v587, %v586
  %v645 = vpack.c.b16 %v589, %v588
  %v646 = vpack.c.b16 %v591, %v590
  %v647 = vpack.c.b16 %v593, %v592
  %v648 = vpack.c.b16 %v595, %v594
  %v649 = vpack.c.b16 %v597, %v596
  %v650 = vpack.c.b16 %v599, %v598
  %v651 = vpack.c.b16 %v601, %v600
  %v652 = vpack.c.b16 %v603, %v602
  %v653 = vpack.c.b16 %v605, %v604
  %v654 = vpack.c.b16 %v607, %v606
  %v655 = vpack.c.b16 %v609, %v608
  %v656 = vpack.c.b16 %v611, %v610
  %v657 = vpack.c.b16 %v613, %v612
  %v658 = vpack.c.b16 %v615, %v614
  %v659 = vpack.c.b16 %v617, %v616
  %v660 = vpack.c.b16 %v619, %v618
  %v661 = vpack.c.b16 %v621, %v620
  %v662 = vpack.c.b16 %v623, %v622
  %v663 = vpack.c.b16 %v625, %v624
  %v664 = vpack.c.b16 %v627, %v626
  %v665 = vpack.c.b16 %v629, %v628
  %v666 = vpack.c.b16 %v631, %v630
  %v667 = vpack.c.b16 %v633, %v632
  %v668 = vpack.c.b16 %v635, %v634
  %v669 = vpack.c.b16 %v637, %v636
  %702 = vmatprep.subr.bf16.mxu0 0
  %703 = vmatpush1.bf16.msra.mxu0 %v645
  %704 = vmatprep.subr.bf16.mxu0 0
  %705 = vmatpush1.bf16.msra.mxu0 %v644
  %706 = vmatprep.subr.bf16.mxu0 0
  %707 = vmatpush1.bf16.msra.mxu0 %v643
  %708 = vmatprep.subr.bf16.mxu0 0
  %709 = vmatpush1.bf16.msra.mxu0 %v642
  %710 = vmatprep.subr.bf16.mxu0 0
  %711 = vmatpush1.bf16.msra.mxu0 %v641
  %712 = vmatprep.subr.bf16.mxu0 0
  %713 = vmatpush1.bf16.msra.mxu0 %v640
  %714 = vmatprep.subr.bf16.mxu0 0
  %715 = vmatpush1.bf16.msra.mxu0 %v639
  %716 = vmatprep.subr.bf16.mxu0 0
  %717 = vmatpush1.bf16.msra.mxu0 %v638
  %718 = vmatprep.subr.bf16.mxu0 0
  %719 = vmatpush2.bf16.msra.mxu0 %v653
  %720 = vmatprep.subr.bf16.mxu0 0
  %721 = vmatpush2.bf16.msra.mxu0 %v652
  %722 = vmatprep.subr.bf16.mxu0 0
  %723 = vmatpush2.bf16.msra.mxu0 %v651
  %724 = vmatprep.subr.bf16.mxu0 0
  %725 = vmatpush2.bf16.msra.mxu0 %v650
  %726 = vmatprep.subr.bf16.mxu0 0
  %727 = vmatpush2.bf16.msra.mxu0 %v649
  %728 = vmatprep.subr.bf16.mxu0 0
  %729 = vmatpush2.bf16.msra.mxu0 %v648
  %730 = vmatprep.subr.bf16.mxu0 0
  %731 = vmatpush2.bf16.msra.mxu0 %v647
  %732 = vmatprep.subr.bf16.mxu0 0
  %733 = vmatpush2.bf16.msra.mxu0 %v646
  %734 = vmatprep.mubr.bf16.mxu0 %v436
  %735 = vmatmul.mubr.bf16.gmra.mxu0 %v435
  %v736 = vpop.f32.mrf.mxu0
  %v737 = vadd.f32 %v508, %v736
  %v738 = vpop.f32.mrf.mxu0
  %v739 = vpop.f32.mrf.mxu0
  %v740 = vadd.f32 %v508, %v739
  %v741 = vpop.f32.mrf.mxu0
  %742 = vdwg.mxu0
  %743 = vmatprep.subr.bf16.mxu0 0
  %744 = vmatpush1.bf16.msra.mxu0 %v661
  %745 = vmatprep.subr.bf16.mxu0 0
  %746 = vmatpush1.bf16.msra.mxu0 %v660
  %747 = vmatprep.subr.bf16.mxu0 0
  %748 = vmatpush1.bf16.msra.mxu0 %v659
  %749 = vmatprep.subr.bf16.mxu0 0
  %750 = vmatpush1.bf16.msra.mxu0 %v658
  %751 = vmatprep.subr.bf16.mxu0 0
  %752 = vmatpush1.bf16.msra.mxu0 %v657
  %753 = vmatprep.subr.bf16.mxu0 0
  %754 = vmatpush1.bf16.msra.mxu0 %v656
  %755 = vmatprep.subr.bf16.mxu0 0
  %756 = vmatpush1.bf16.msra.mxu0 %v655
  %757 = vmatprep.subr.bf16.mxu0 0
  %758 = vmatpush1.bf16.msra.mxu0 %v654
  %759 = vmatprep.subr.bf16.mxu0 0
  %760 = vmatpush2.bf16.msra.mxu0 %v669
  %761 = vmatprep.subr.bf16.mxu0 0
  %762 = vmatpush2.bf16.msra.mxu0 %v668
  %763 = vmatprep.subr.bf16.mxu0 0
  %764 = vmatpush2.bf16.msra.mxu0 %v667
  %765 = vmatprep.subr.bf16.mxu0 0
  %766 = vmatpush2.bf16.msra.mxu0 %v666
  %767 = vmatprep.subr.bf16.mxu0 0
  %768 = vmatpush2.bf16.msra.mxu0 %v665
  %769 = vmatprep.subr.bf16.mxu0 0
  %770 = vmatpush2.bf16.msra.mxu0 %v664
  %771 = vmatprep.subr.bf16.mxu0 0
  %772 = vmatpush2.bf16.msra.mxu0 %v663
  %773 = vmatprep.subr.bf16.mxu0 0
  %774 = vmatpush2.bf16.msra.mxu0 %v662
  %775 = vmatprep.mubr.bf16.mxu0 %v438
  %776 = vmatmul.mubr.bf16.gmra.mxu0 %v437
  %v777 = vpop.f32.mrf.mxu0
  %v778 = vadd.f32 %v737, %v777
  %v779 = vpop.f32.mrf.mxu0
  %v780 = vpop.f32.mrf.mxu0
  %v781 = vadd.f32 %v740, %v780
  %v782 = vpop.f32.mrf.mxu0
  %783 = vdwg.mxu0
  %v784 = vadd.f32 %v27, %v778
  %v785 = vadd.f32 %v28, %v781
  %786 = vst [vmem:[%s7] sm:$0xff] %v784
  %787 = vst [vmem:[%s7 + $0x8] sm:$0xff] %v785
  // Predicated region
  $region30: #{gated_sf_attention_block.3} parent=0 // pred_check
    _
  $region31: #{gated_sf_attention_block.3} parent=0 // pred_check_branch
    %789 = sbr.rel (0) target = $region33
  $region32: #{gated_sf_attention_block.3} parent=0 // pred_region
    _
  $region33: #{gated_sf_attention_block.3} parent=0 // pred_fallthru
    _
  // Predicated region
  $region34: #{gated_sf_attention_block.3} parent=0 // pred_check
    _
  $region35: #{gated_sf_attention_block.3} parent=0 // pred_check_branch
    %791 = sbr.rel (0) target = $region37
  $region36: #{gated_sf_attention_block.3} parent=0 // pred_region
    _
  $region37: #{gated_sf_attention_block.3} parent=0 // pred_fallthru
    _

</llo_original>
